<compile_context>
chip_gen: v7x
topology: tpu7x:2x2x1
jax: 0.10.0
libtpu: 0.0.40
codegen_flags: <defaults>
</compile_context>

<pallas_src>
import functools

import jax
import jax.numpy as jnp
from jax import lax
from jax.experimental import pallas as pl
from jax.experimental.pallas import tpu as pltpu


def _round_up(v, m):
    return ((v + m - 1) // m) * m


def _vmem_budget():
    """Per-generation VMEM budget: v7x has 64 MiB/TC, older gens 128 MiB."""
    try:
        kind = jax.devices()[0].device_kind.lower()
    except Exception:
        return 32 * 1024 * 1024
    if any(tag in kind for tag in ("v4", "v5", "v6")):
        return 64 * 1024 * 1024
    return 32 * 1024 * 1024  # v7x / unknown: stay under 64 MiB/TC


_VMEM_LIMIT = _vmem_budget()
_TARGET_M_ROWS = 2048 if _VMEM_LIMIT >= 64 * 1024 * 1024 else 1024
_ACC_CAP_ELEMS = 256 * 1024  # cap the per-block f32 accumulator at ~1 MiB


def _pick_bh(ho, wp, cout):
    """Largest divisor of ho with bh*wp <= row target and a bounded f32 acc."""
    max_rows = max(1, min(_TARGET_M_ROWS // wp, _ACC_CAP_ELEMS // (wp * cout)))
    bh = 1
    for d in range(1, ho + 1):
        if ho % d == 0 and d <= max_rows:
            bh = d
    return bh


# ----------------------------------------------------------------------------
# Pallas kernels
# ----------------------------------------------------------------------------
def _conv_kernel(*refs, kk_y, kk_x, bh, wp, relu, has_res):
    """Fused conv + folded-BN affine (+ residual) (+ ReLU); all taps unrolled.

    Grid (N, row_blocks).

    refs:
      x_ref     (Hp*Wp, Cin_eff)            bf16  whole padded image (flattened)
      w_ref     (kk_y, kk_x, Cin_eff, Cout) bf16  VMEM-resident, fetched once
      scale_ref (1, Cout) f32, shift_ref (1, Cout) f32
      [res_ref  (bh*Wp, Cout) bf16]
      o_ref     (bh*Wp, Cout) bf16
    """
    if has_res:
        x_ref, w_ref, scale_ref, shift_ref, res_ref, o_ref = refs
    else:
        x_ref, w_ref, scale_ref, shift_ref, o_ref = refs
        res_ref = None

    j = pl.program_id(1)
    mblk = bh * wp

    acc = None
    for dy in range(kk_y):
        # Output rows [j*bh, j*bh+bh) at tap (dy, dx) read padded-input rows
        # starting at flat offset (j*bh + dy)*Wp + dx (contiguous bh*Wp rows;
        # wrap-around only pollutes the discarded columns >= Wo).
        base = pl.multiple_of((j * bh + dy) * wp, 8)
        for dx in range(kk_x):
            lhs = x_ref[pl.ds(base + dx, mblk), :]
            part = jnp.dot(lhs, w_ref[dy, dx],
                           preferred_element_type=jnp.float32)
            acc = part if acc is None else acc + part

    y = acc * scale_ref[...] + shift_ref[...]
    if res_ref is not None:
        y = y + res_ref[...].astype(jnp.float32)
    if relu:
        y = jnp.maximum(y, 0.0)
    o_ref[...] = y.astype(o_ref.dtype)


def _maxpool_kernel(p00_ref, p01_ref, p10_ref, p11_ref, o_ref, *, ho, wo):
    """3x3/s2/p1 max pool on a phase-decomposed (space-to-depth) image."""
    phase = {(0, 0): p00_ref, (0, 1): p01_ref, (1, 0): p10_ref, (1, 1): p11_ref}
    out = None
    # dy = 2*ey + py in {0,1,2}  -> (ey,py) in {(0,0),(0,1),(1,0)}; same for dx.
    for ey, py in ((0, 0), (0, 1), (1, 0)):
        for ex, px in ((0, 0), (0, 1), (1, 0)):
            r = phase[(py, px)]
            win = r[pl.ds(ey, ho), pl.ds(ex, wo), :]
            out = win if out is None else jnp.maximum(out, win)
    o_ref[...] = out


def _gap_kernel(x_ref, o_ref, *, inv_p):
    """Global average pool over the whole batch: (N, P, C) -> (N, C) f32."""
    s = jnp.sum(x_ref[...].astype(jnp.float32), axis=1)
    o_ref[...] = s * inv_p


# ----------------------------------------------------------------------------
# Space-to-depth helpers (turn stride-2 convs into stride-1 convs)
# ----------------------------------------------------------------------------
def _space_to_depth(xp):
    n, h2, w2, c = xp.shape
    xs = xp.reshape(n, h2 // 2, 2, w2 // 2, 2, c)
    xs = xs.transpose(0, 1, 3, 2, 4, 5)
    return xs.reshape(n, h2 // 2, w2 // 2, 4 * c)


def _s2d_weights(w, kk):
    """(Cout, Cin, k, k) torch-layout weight -> (kk, kk, 4*Cin, Cout) matching
    the space-to-depth channel order ((py*2+px)*Cin + ci)."""
    cout, cin, k, _ = w.shape
    wpad = jnp.pad(w, ((0, 0), (0, 0), (0, 2 * kk - k), (0, 2 * kk - k)))
    wpad = wpad.reshape(cout, cin, kk, 2, kk, 2)      # (co, ci, ey, py, ex, px)
    wpad = wpad.transpose(2, 4, 3, 5, 1, 0)           # (ey, ex, py, px, ci, co)
    return wpad.reshape(kk, kk, 4 * cin, cout)


# ----------------------------------------------------------------------------
# Conv2d(no bias) + folded BN (+ residual) (+ ReLU), NHWC, bf16 activations
# ----------------------------------------------------------------------------
def conv_bn_act(x, w, bn, *, stride, pad, relu, residual=None):
    scale, shift = bn
    N, H, W, _ = x.shape
    cout, cin, k, _ = w.shape
    Ho = (H + 2 * pad - k) // stride + 1
    Wo = (W + 2 * pad - k) // stride + 1

    if stride == 1:
        kk_y = kk_x = k
        reach = k - 1
        Wp = _round_up(Wo + reach, 8)
        Hp = Ho + k
        xs = jnp.pad(x, ((0, 0), (pad, Hp - H - pad), (pad, Wp - W - pad), (0, 0)))
        w4 = jnp.transpose(w, (2, 3, 1, 0))           # (k, k, Cin, Cout)
        cin_eff = cin
        x_flat = xs.reshape(N, Hp * Wp, cin_eff)
    elif k == 1:
        # 1x1 stride-2 downsample: subsample, then it is a 1x1 stride-1 conv.
        xsub = x[:, ::stride, ::stride, :]
        kk_y = kk_x = 1
        reach = 0
        Wp = _round_up(Wo, 8)
        Hp = Ho
        xs = jnp.pad(xsub, ((0, 0), (0, Hp - xsub.shape[1]),
                            (0, Wp - xsub.shape[2]), (0, 0)))
        w4 = jnp.transpose(w, (2, 3, 1, 0))           # (1, 1, Cin, Cout)
        cin_eff = cin
        x_flat = xs.reshape(N, Hp * Wp, cin_eff)
    else:
        # kxk stride-2 conv -> space-to-depth + stride-1 ceil(k/2) conv.
        kk = (k + 1) // 2
        reach = kk - 1
        Wp = _round_up(Wo + reach, 8)
        Hp = Ho + kk
        xp = jnp.pad(x, ((0, 0), (pad, 2 * Hp - H - pad),
                         (pad, 2 * Wp - W - pad), (0, 0)))
        xs = _space_to_depth(xp)                      # (N, Hp, Wp, 4*Cin)
        w4 = _s2d_weights(w, kk)                      # (kk, kk, 4*Cin, Cout)
        cin_eff = 4 * cin
        x_flat = xs.reshape(N, Hp * Wp, cin_eff)
        if cin_eff <= 16:
            # Stem: fold the kk column taps into the matmul K dimension so one
            # aligned K=kk*4*cin dot replaces kk masked K=4*cin dots.  The
            # flat rolls wrap only into discarded columns / rows.
            x_flat = jnp.concatenate(
                [jnp.roll(x_flat, -dx, axis=1) for dx in range(kk)], axis=-1)
            w4 = w4.reshape(kk, 1, kk * cin_eff, cout)
            cin_eff = kk * cin_eff
            kk_y, kk_x = kk, 1
        else:
            kk_y, kk_x = kk, kk

    # Flat-window invariants (VMEM refs have no OOB checks -> keep these).
    assert Wp % 8 == 0, Wp
    assert Wp >= Wo + reach, (Wp, Wo, reach)
    assert Hp >= Ho + kk_y - 1, (Hp, Ho, kk_y)

    n = N
    wp_ = Wp
    hp = Hp
    x_flat = x_flat.astype(jnp.bfloat16)
    w4b = w4.astype(jnp.bfloat16)

    bh = _pick_bh(Ho, wp_, cout)
    assert Ho % bh == 0
    num_rb = Ho // bh
    mblk = bh * wp_

    args = [x_flat, w4b, scale, shift]
    in_specs = [
        pl.BlockSpec((None, hp * wp_, cin_eff), lambda i, j: (i, 0, 0)),
        pl.BlockSpec((kk_y, kk_x, cin_eff, cout), lambda i, j: (0, 0, 0, 0)),
        pl.BlockSpec((1, cout), lambda i, j: (0, 0)),
        pl.BlockSpec((1, cout), lambda i, j: (0, 0)),
    ]
    if residual is not None:
        if wp_ != Wo:
            res = jnp.pad(residual, ((0, 0), (0, 0), (0, wp_ - Wo), (0, 0)))
        else:
            res = residual
        res = res.reshape(n, Ho * wp_, cout).astype(jnp.bfloat16)
        args.append(res)
        in_specs.append(pl.BlockSpec((None, mblk, cout), lambda i, j: (i, j, 0)))

    kernel = functools.partial(
        _conv_kernel, kk_y=kk_y, kk_x=kk_x, bh=bh, wp=wp_, relu=relu,
        has_res=residual is not None)

    out = pl.pallas_call(
        kernel,
        out_shape=jax.ShapeDtypeStruct((n, Ho * wp_, cout), jnp.bfloat16),
        grid=(n, num_rb),
        in_specs=in_specs,
        out_specs=pl.BlockSpec((None, mblk, cout), lambda i, j: (i, j, 0)),
        compiler_params=pltpu.CompilerParams(
            dimension_semantics=("parallel", "parallel"),
            vmem_limit_bytes=_VMEM_LIMIT,
        ),
    )(*args)

    out = out.reshape(n, Ho, wp_, cout)
    if wp_ != Wo:
        out = out[:, :, :Wo, :]
    return out


# ----------------------------------------------------------------------------
# MaxPool2d(kernel=3, stride=2, padding=1), NHWC
# ----------------------------------------------------------------------------
def maxpool_3x3_s2_p1(x):
    N, H, W, C = x.shape
    Ho = (H - 1) // 2 + 1
    Wo = (W - 1) // 2 + 1
    Hs = Ho + 1
    Ws = Wo + 1
    # Zero padding is exact here because the input is post-ReLU (>= 0).
    xp = jnp.pad(x, ((0, 0), (1, 2 * Hs - H - 1), (1, 2 * Ws - W - 1), (0, 0)))
    phases = [xp[:, py::2, px::2, :] for py in (0, 1) for px in (0, 1)]

    kernel = functools.partial(_maxpool_kernel, ho=Ho, wo=Wo)
    return pl.pallas_call(
        kernel,
        out_shape=jax.ShapeDtypeStruct((N, Ho, Wo, C), x.dtype),
        grid=(N,),
        in_specs=[pl.BlockSpec((None, Hs, Ws, C), lambda i: (i, 0, 0, 0))] * 4,
        out_specs=pl.BlockSpec((None, Ho, Wo, C), lambda i: (i, 0, 0, 0)),
        compiler_params=pltpu.CompilerParams(
            dimension_semantics=("parallel",),
            vmem_limit_bytes=_VMEM_LIMIT,
        ),
    )(*phases)


# ----------------------------------------------------------------------------
# AdaptiveAvgPool2d((1,1)), NHWC -> (N, C) f32, whole batch in one grid step
# ----------------------------------------------------------------------------
def global_avgpool(x):
    N, H, W, C = x.shape
    P = H * W
    xr = x.reshape(N, P, C)
    out = pl.pallas_call(
        functools.partial(_gap_kernel, inv_p=1.0 / float(P)),
        out_shape=jax.ShapeDtypeStruct((N, C), jnp.float32),
        grid=(1,),
        in_specs=[pl.BlockSpec((N, P, C), lambda i: (0, 0, 0))],
        out_specs=pl.BlockSpec((N, C), lambda i: (0, 0)),
        compiler_params=pltpu.CompilerParams(vmem_limit_bytes=_VMEM_LIMIT),
    )(xr)
    return out


# ----------------------------------------------------------------------------
# ResNet18 structure
# ----------------------------------------------------------------------------
def basic_block(x, bp, stride):
    if "down_conv" in bp:
        identity = conv_bn_act(x, bp["down_conv"], bp["down_bn"],
                               stride=stride, pad=0, relu=False)
    else:
        identity = x
    out = conv_bn_act(x, bp["conv1"], bp["bn1"], stride=stride, pad=1, relu=True)
    out = conv_bn_act(out, bp["conv2"], bp["bn2"], stride=1, pad=1, relu=True,
                      residual=identity)
    return out


def resnet_layer(x, blocks, stride):
    x = basic_block(x, blocks[0], stride)
    x = basic_block(x, blocks[1], 1)
    return x


def shot_encoder_forward(params, x):
    """x: (B, S, C, H, W) float32 -> (B, S, 512) float32"""
    B, S, C, H, W = x.shape
    x = x.reshape(B * S, C, H, W).transpose(0, 2, 3, 1).astype(jnp.bfloat16)

    # stem: conv7x7 s2 p3 + bn + relu, maxpool 3x3 s2 p1
    x = conv_bn_act(x, params["conv1"], params["bn1"], stride=2, pad=3, relu=True)
    x = maxpool_3x3_s2_p1(x)

    x = resnet_layer(x, params["layer1"], stride=1)
    x = resnet_layer(x, params["layer2"], stride=2)
    x = resnet_layer(x, params["layer3"], stride=2)
    x = resnet_layer(x, params["layer4"], stride=2)

    feat = global_avgpool(x)                 # (B*S, 512) f32
    return feat.reshape(B, S, feat.shape[-1])


# ----------------------------------------------------------------------------
# Deterministic synthetic parameter init (ResNet18 shapes, eval-mode BN folded)
# ----------------------------------------------------------------------------
def _conv_init(key, cout, cin, k):
    fan_in = cin * k * k
    return (jax.random.normal(key, (cout, cin, k, k), jnp.float32)
            * jnp.sqrt(2.0 / fan_in))


def _bn_fold(key, c, eps=1e-5):
    k1, k2, k3, k4 = jax.random.split(key, 4)
    gamma = 1.0 + 0.1 * jax.random.normal(k1, (c,), jnp.float32)
    beta = 0.1 * jax.random.normal(k2, (c,), jnp.float32)
    rmean = 0.1 * jax.random.normal(k3, (c,), jnp.float32)
    rvar = jax.random.uniform(k4, (c,), jnp.float32, minval=0.5, maxval=1.5)
    scale = gamma / jnp.sqrt(rvar + eps)
    shift = beta - rmean * scale
    return scale.reshape(1, c), shift.reshape(1, c)


def init_params(key):
    keys = iter(jax.random.split(key, 128))
    p = {}
    p["conv1"] = _conv_init(next(keys), 64, 3, 7)
    p["bn1"] = _bn_fold(next(keys), 64)

    def block_params(in_c, out_c, downsample):
        bp = {
            "conv1": _conv_init(next(keys), out_c, in_c, 3),
            "bn1": _bn_fold(next(keys), out_c),
            "conv2": _conv_init(next(keys), out_c, out_c, 3),
            "bn2": _bn_fold(next(keys), out_c),
        }
        if downsample:
            bp["down_conv"] = _conv_init(next(keys), out_c, in_c, 1)
            bp["down_bn"] = _bn_fold(next(keys), out_c)
        return bp

    p["layer1"] = [block_params(64, 64, False), block_params(64, 64, False)]
    p["layer2"] = [block_params(64, 128, True), block_params(128, 128, False)]
    p["layer3"] = [block_params(128, 256, True), block_params(256, 256, False)]
    p["layer4"] = [block_params(256, 512, True), block_params(512, 512, False)]
    return p


# ----------------------------------------------------------------------------
# Reference helpers for self-checks
# ----------------------------------------------------------------------------
def _conv_ref(x, w, bn, *, stride, pad, relu, residual=None):
    scale, shift = bn
    y = lax.conv_general_dilated(
        x.astype(jnp.float32),
        jnp.transpose(w, (2, 3, 1, 0)).astype(jnp.float32),
        window_strides=(stride, stride),
        padding=[(pad, pad), (pad, pad)],
        dimension_numbers=("NHWC", "HWIO", "NHWC"))
    y = y * scale.reshape(1, 1, 1, -1) + shift.reshape(1, 1, 1, -1)
    if residual is not None:
        y = y + residual.astype(jnp.float32)
    if relu:
        y = jnp.maximum(y, 0.0)
    return y


def _check_close(got, want, tol, name):
    got = jnp.asarray(got, jnp.float32)
    want = jnp.asarray(want, jnp.float32)
    err = float(jnp.max(jnp.abs(got - want)))
    ref = float(jnp.max(jnp.abs(want))) + 1e-6
    assert err <= tol * ref, (name, err, ref)


def _self_check(key):
    tol = 2e-2
    k1, k2, k3, k4, k5, k6, k7, k8 = jax.random.split(key, 8)

    # 1) Stem-style 7x7 stride-2 pad-3 (folded-K path).
    x = jax.random.normal(k1, (2, 20, 20, 3), jnp.float32).astype(jnp.bfloat16)
    w = _conv_init(k2, 64, 3, 7).astype(jnp.bfloat16)
    bn = _bn_fold(k3, 64)
    got = conv_bn_act(x, w, bn, stride=2, pad=3, relu=True)
    want = _conv_ref(x, w, bn, stride=2, pad=3, relu=True)
    _check_close(got, want, tol, "conv7x7s2")

    # 2) 3x3 stride-1 pad-1 with residual + ReLU.
    x = jax.random.normal(k4, (2, 12, 12, 64), jnp.float32).astype(jnp.bfloat16)
    w = _conv_init(k5, 64, 64, 3).astype(jnp.bfloat16)
    bn = _bn_fold(k6, 64)
    res = jax.random.normal(k7, (2, 12, 12, 64), jnp.float32).astype(jnp.bfloat16)
    got = conv_bn_act(x, w, bn, stride=1, pad=1, relu=True, residual=res)
    want = _conv_ref(x, w, bn, stride=1, pad=1, relu=True, residual=res)
    _check_close(got, want, tol, "conv3x3s1+res")

    # 3) 3x3 stride-2 pad-1 (space-to-depth path, no fold).
    x = jax.random.normal(k8, (2, 13, 13, 64), jnp.float32).astype(jnp.bfloat16)
    w = _conv_init(k2, 128, 64, 3).astype(jnp.bfloat16)
    bn = _bn_fold(k3, 128)
    got = conv_bn_act(x, w, bn, stride=2, pad=1, relu=False)
    want = _conv_ref(x, w, bn, stride=2, pad=1, relu=False)
    _check_close(got, want, tol, "conv3x3s2")

    # 4) 1x1 stride-2 downsample.
    w = _conv_init(k5, 128, 64, 1).astype(jnp.bfloat16)
    got = conv_bn_act(x, w, bn, stride=2, pad=0, relu=False)
    want = _conv_ref(x, w, bn, stride=2, pad=0, relu=False)
    _check_close(got, want, tol, "conv1x1s2")

    # 5) MaxPool 3x3/s2/p1 on a post-ReLU input.
    xr = jnp.maximum(
        jax.random.normal(k1, (2, 13, 13, 64), jnp.float32), 0.0
    ).astype(jnp.bfloat16)
    got = maxpool_3x3_s2_p1(xr)
    want = lax.reduce_window(xr.astype(jnp.float32), -jnp.inf, lax.max,
                             (1, 3, 3, 1), (1, 2, 2, 1),
                             [(0, 0), (1, 1), (1, 1), (0, 0)])
    _check_close(got, want, 1e-3, "maxpool")

    # 6) Global average pool.
    got = global_avgpool(xr)
    want = jnp.mean(xr.astype(jnp.float32), axis=(1, 2))
    _check_close(got, want, 1e-3, "gap")


# ----------------------------------------------------------------------------
if __name__ == "__main__":
    key = jax.random.PRNGKey(0)
    k_params, k_x, k_chk = jax.random.split(key, 3)

    # Per-layer correctness self-checks against XLA references.
    _self_check(k_chk)

    # Small but ResNet18-compatible shapes: B=2 clips, S=2 shots, 3x64x64 frames.
    B, S, C, H, W = 2, 2, 3, 64, 64
    x = jax.random.normal(k_x, (B, S, C, H, W), jnp.float32)

    params = init_params(k_params)

    forward = jax.jit(shot_encoder_forward)
    out = forward(params, x)
    out = jax.block_until_ready(out)

    assert out.shape == (B, S, 512), out.shape
    assert out.dtype == jnp.float32
    assert bool(jnp.all(jnp.isfinite(out)))
    print("KERNEL_OK")
</pallas_src>

<mosaic_0001>
module attributes {stable_mosaic.version = 11 : i64} {
  func.func @_conv_kernel(%arg0: i32, %arg1: i32, %arg2: memref<1x224x48xbf16, #tpu.memory_space<vmem>>, %arg3: memref<4x1x48x64xbf16, #tpu.memory_space<vmem>>, %arg4: memref<1x64xf32, #tpu.memory_space<vmem>>, %arg5: memref<1x64xf32, #tpu.memory_space<vmem>>, %arg6: memref<1x160x64xbf16, #tpu.memory_space<vmem>>) attributes {dimension_semantics = [#tpu.dimension_semantics<parallel>, #tpu.dimension_semantics<parallel>], iteration_bounds = array<i64: 2, 1>, scalar_prefetch = 0 : i64, scratch_operands = 0 : i64, tpu.core_type = #tpu.core_type<tc>, window_params = [{transform_indices = @transform_0, window_bounds = array<i64: 1, 224, 48>}, {pipeline_mode = #tpu.pipeline_mode<synchronous>, transform_indices = @transform_1, window_bounds = array<i64: 4, 1, 48, 64>}, {pipeline_mode = #tpu.pipeline_mode<synchronous>, transform_indices = @transform_2, window_bounds = array<i64: 1, 64>}, {pipeline_mode = #tpu.pipeline_mode<synchronous>, transform_indices = @transform_3, window_bounds = array<i64: 1, 64>}, {transform_indices = @transform_4, window_bounds = array<i64: 1, 160, 64>}]} {
    %c10_i32 = arith.constant 10 : i32
    %0 = arith.muli %arg1, %c10_i32 : i32
    %c0_i32 = arith.constant 0 : i32
    %1 = arith.addi %0, %c0_i32 : i32
    %c16_i32 = arith.constant 16 : i32
    %2 = arith.muli %1, %c16_i32 : i32
    %3 = tpu.assume_multiple %2, 8 : i32
    %c0_i32_0 = arith.constant 0 : i32
    %4 = arith.addi %3, %c0_i32_0 : i32
    %c0 = arith.constant 0 : index
    %5 = arith.index_cast %4 : i32 to index
    %c0_1 = arith.constant 0 : index
    %6 = vector.load %arg2[%c0, %5, %c0_1] : memref<1x224x48xbf16, #tpu.memory_space<vmem>>, vector<1x160x48xbf16>
    %7 = vector.shape_cast %6 : vector<1x160x48xbf16> to vector<160x48xbf16>
    %c0_2 = arith.constant 0 : index
    %c0_3 = arith.constant 0 : index
    %c0_4 = arith.constant 0 : index
    %c0_5 = arith.constant 0 : index
    %8 = vector.load %arg3[%c0_2, %c0_3, %c0_4, %c0_5] : memref<4x1x48x64xbf16, #tpu.memory_space<vmem>>, vector<1x1x48x64xbf16>
    %9 = vector.shape_cast %8 : vector<1x1x48x64xbf16> to vector<48x64xbf16>
    %cst = arith.constant dense<0.000000e+00> : vector<160x64xf32>
    %10 = tpu.matmul %7, %9, %cst {dimension_numbers = #tpu.dot_dimension_numbers<[1], [0], [0], [1], [0, 0, 1, 1], [], []>} : vector<160x48xbf16>, vector<48x64xbf16>, vector<160x64xf32> -> vector<160x64xf32>
    %c10_i32_6 = arith.constant 10 : i32
    %11 = arith.muli %arg1, %c10_i32_6 : i32
    %c1_i32 = arith.constant 1 : i32
    %12 = arith.addi %11, %c1_i32 : i32
    %c16_i32_7 = arith.constant 16 : i32
    %13 = arith.muli %12, %c16_i32_7 : i32
    %14 = tpu.assume_multiple %13, 8 : i32
    %c0_i32_8 = arith.constant 0 : i32
    %15 = arith.addi %14, %c0_i32_8 : i32
    %c0_9 = arith.constant 0 : index
    %16 = arith.index_cast %15 : i32 to index
    %c0_10 = arith.constant 0 : index
    %17 = vector.load %arg2[%c0_9, %16, %c0_10] : memref<1x224x48xbf16, #tpu.memory_space<vmem>>, vector<1x160x48xbf16>
    %18 = vector.shape_cast %17 : vector<1x160x48xbf16> to vector<160x48xbf16>
    %c1 = arith.constant 1 : index
    %c0_11 = arith.constant 0 : index
    %c0_12 = arith.constant 0 : index
    %c0_13 = arith.constant 0 : index
    %19 = vector.load %arg3[%c1, %c0_11, %c0_12, %c0_13] : memref<4x1x48x64xbf16, #tpu.memory_space<vmem>>, vector<1x1x48x64xbf16>
    %20 = vector.shape_cast %19 : vector<1x1x48x64xbf16> to vector<48x64xbf16>
    %cst_14 = arith.constant dense<0.000000e+00> : vector<160x64xf32>
    %21 = tpu.matmul %18, %20, %cst_14 {dimension_numbers = #tpu.dot_dimension_numbers<[1], [0], [0], [1], [0, 0, 1, 1], [], []>} : vector<160x48xbf16>, vector<48x64xbf16>, vector<160x64xf32> -> vector<160x64xf32>
    %22 = arith.addf %10, %21 : vector<160x64xf32>
    %c10_i32_15 = arith.constant 10 : i32
    %23 = arith.muli %arg1, %c10_i32_15 : i32
    %c2_i32 = arith.constant 2 : i32
    %24 = arith.addi %23, %c2_i32 : i32
    %c16_i32_16 = arith.constant 16 : i32
    %25 = arith.muli %24, %c16_i32_16 : i32
    %26 = tpu.assume_multiple %25, 8 : i32
    %c0_i32_17 = arith.constant 0 : i32
    %27 = arith.addi %26, %c0_i32_17 : i32
    %c0_18 = arith.constant 0 : index
    %28 = arith.index_cast %27 : i32 to index
    %c0_19 = arith.constant 0 : index
    %29 = vector.load %arg2[%c0_18, %28, %c0_19] : memref<1x224x48xbf16, #tpu.memory_space<vmem>>, vector<1x160x48xbf16>
    %30 = vector.shape_cast %29 : vector<1x160x48xbf16> to vector<160x48xbf16>
    %c2 = arith.constant 2 : index
    %c0_20 = arith.constant 0 : index
    %c0_21 = arith.constant 0 : index
    %c0_22 = arith.constant 0 : index
    %31 = vector.load %arg3[%c2, %c0_20, %c0_21, %c0_22] : memref<4x1x48x64xbf16, #tpu.memory_space<vmem>>, vector<1x1x48x64xbf16>
    %32 = vector.shape_cast %31 : vector<1x1x48x64xbf16> to vector<48x64xbf16>
    %cst_23 = arith.constant dense<0.000000e+00> : vector<160x64xf32>
    %33 = tpu.matmul %30, %32, %cst_23 {dimension_numbers = #tpu.dot_dimension_numbers<[1], [0], [0], [1], [0, 0, 1, 1], [], []>} : vector<160x48xbf16>, vector<48x64xbf16>, vector<160x64xf32> -> vector<160x64xf32>
    %34 = arith.addf %22, %33 : vector<160x64xf32>
    %c10_i32_24 = arith.constant 10 : i32
    %35 = arith.muli %arg1, %c10_i32_24 : i32
    %c3_i32 = arith.constant 3 : i32
    %36 = arith.addi %35, %c3_i32 : i32
    %c16_i32_25 = arith.constant 16 : i32
    %37 = arith.muli %36, %c16_i32_25 : i32
    %38 = tpu.assume_multiple %37, 8 : i32
    %c0_i32_26 = arith.constant 0 : i32
    %39 = arith.addi %38, %c0_i32_26 : i32
    %c0_27 = arith.constant 0 : index
    %40 = arith.index_cast %39 : i32 to index
    %c0_28 = arith.constant 0 : index
    %41 = vector.load %arg2[%c0_27, %40, %c0_28] : memref<1x224x48xbf16, #tpu.memory_space<vmem>>, vector<1x160x48xbf16>
    %42 = vector.shape_cast %41 : vector<1x160x48xbf16> to vector<160x48xbf16>
    %c3 = arith.constant 3 : index
    %c0_29 = arith.constant 0 : index
    %c0_30 = arith.constant 0 : index
    %c0_31 = arith.constant 0 : index
    %43 = vector.load %arg3[%c3, %c0_29, %c0_30, %c0_31] : memref<4x1x48x64xbf16, #tpu.memory_space<vmem>>, vector<1x1x48x64xbf16>
    %44 = vector.shape_cast %43 : vector<1x1x48x64xbf16> to vector<48x64xbf16>
    %cst_32 = arith.constant dense<0.000000e+00> : vector<160x64xf32>
    %45 = tpu.matmul %42, %44, %cst_32 {dimension_numbers = #tpu.dot_dimension_numbers<[1], [0], [0], [1], [0, 0, 1, 1], [], []>} : vector<160x48xbf16>, vector<48x64xbf16>, vector<160x64xf32> -> vector<160x64xf32>
    %46 = arith.addf %34, %45 : vector<160x64xf32>
    %c0_33 = arith.constant 0 : index
    %c0_34 = arith.constant 0 : index
    %47 = vector.load %arg4[%c0_33, %c0_34] : memref<1x64xf32, #tpu.memory_space<vmem>>, vector<1x64xf32>
    %48 = vector.broadcast %47 : vector<1x64xf32> to vector<160x64xf32>
    %49 = arith.mulf %46, %48 : vector<160x64xf32>
    %c0_35 = arith.constant 0 : index
    %c0_36 = arith.constant 0 : index
    %50 = vector.load %arg5[%c0_35, %c0_36] : memref<1x64xf32, #tpu.memory_space<vmem>>, vector<1x64xf32>
    %51 = vector.broadcast %50 : vector<1x64xf32> to vector<160x64xf32>
    %52 = arith.addf %49, %51 : vector<160x64xf32>
    %cst_37 = arith.constant 0.000000e+00 : f32
    %53 = vector.broadcast %cst_37 : f32 to vector<160x64xf32>
    %54 = arith.maximumf %52, %53 : vector<160x64xf32>
    %55 = arith.truncf %54 : vector<160x64xf32> to vector<160x64xbf16>
    %c0_38 = arith.constant 0 : index
    %c0_39 = arith.constant 0 : index
    %c0_40 = arith.constant 0 : index
    %56 = vector.load %arg6[%c0_38, %c0_39, %c0_40] : memref<1x160x64xbf16, #tpu.memory_space<vmem>>, vector<1x160x64xbf16>
    %57 = vector.shape_cast %56 : vector<1x160x64xbf16> to vector<160x64xbf16>
    %58 = vector.shape_cast %55 : vector<160x64xbf16> to vector<1x160x64xbf16>
    tpu.vector_store %arg6[%c0_38, %c0_39, %c0_40], %58 {strides = array<i32>} : memref<1x160x64xbf16, #tpu.memory_space<vmem>>, vector<1x160x64xbf16>,
    return
  }
  func.func @transform_0(%arg0: i32, %arg1: i32) -> (i32, i32, i32) {
    %c0_i32 = arith.constant 0 : i32
    %c0_i32_0 = arith.constant 0 : i32
    %c0_i32_1 = arith.constant 0 : i32
    return %arg0, %c0_i32, %c0_i32_0 : i32, i32, i32
  }
  func.func @transform_1(%arg0: i32, %arg1: i32) -> (i32, i32, i32, i32) {
    %c0_i32 = arith.constant 0 : i32
    %c0_i32_0 = arith.constant 0 : i32
    %c0_i32_1 = arith.constant 0 : i32
    %c0_i32_2 = arith.constant 0 : i32
    %c0_i32_3 = arith.constant 0 : i32
    return %c0_i32, %c0_i32_0, %c0_i32_1, %c0_i32_2 : i32, i32, i32, i32
  }
  func.func @transform_2(%arg0: i32, %arg1: i32) -> (i32, i32) {
    %c0_i32 = arith.constant 0 : i32
    %c0_i32_0 = arith.constant 0 : i32
    %c0_i32_1 = arith.constant 0 : i32
    return %c0_i32, %c0_i32_0 : i32, i32
  }
  func.func @transform_3(%arg0: i32, %arg1: i32) -> (i32, i32) {
    %c0_i32 = arith.constant 0 : i32
    %c0_i32_0 = arith.constant 0 : i32
    %c0_i32_1 = arith.constant 0 : i32
    return %c0_i32, %c0_i32_0 : i32, i32
  }
  func.func @transform_4(%arg0: i32, %arg1: i32) -> (i32, i32, i32) {
    %c0_i32 = arith.constant 0 : i32
    %c0_i32_0 = arith.constant 0 : i32
    return %arg0, %arg1, %c0_i32 : i32, i32, i32
  }
}

</mosaic_0001>

<llo_original>
// kernel: tpu_custom_call.1
$region0: #{tpu_custom_call.1}
  #allocation0 [shape = 'u32[]', space=smem, size = 0x4, offset = 0x4, fixed_abs, tag = 'smem constant byte address 0x4 - core index']
  #allocation1 [shape = 'u32[144,128]{1,0:T(1,128)}', space=vmem, size = 0x12000, scoped, tag = 'internal scratch']
  %s0 = inlined_call_operand.vmem [shape: bf16[2,224,48], index: 0, kind: input, shape index: {}]
  %s1 = inlined_call_operand.vmem [shape: bf16[4,1,48,64], index: 1, kind: input, shape index: {}]
  %s2 = inlined_call_operand.vmem [shape: f32[1,64], index: 2, kind: input, shape index: {}]
  %s3 = inlined_call_operand.vmem [shape: f32[1,64], index: 3, kind: input, shape index: {}]
  %s4 = inlined_call_operand.vmem [shape: bf16[2,160,64], index: 4, kind: output, shape index: {}]
  %s5 = sld [smem:[#allocation0]]
  $region49: #{tpu_custom_call.1} parent=0
    _
  %s7 = ssub.s32 1, %s5
  %s8 = scalar_select 0, %s7, %s5
  loop: start=0, step=1, limit=4
  $region2: #{tpu_custom_call.1} parent=0 // loop_pre_header
    _
  $region3: #{tpu_custom_call.1} parent=0 // loop_header
    %s10 = sphi 0, %s14
    %p11 = scmp.ge.s32.totalorder %s10, 4
    %s17 = sphi 0, %s29
    %s18 = sphi 0, %s25
    %s19 = sphi 0, %s17
    %s20 = sphi 0, %s18
    %s21 = sphi 0, %s19
    %s22 = sphi 0, %s20
    %s32 = sphi 0, %s34
    %s35 = sphi 0, %s32
    %s36 = sphi 0, %s35
    %s52 = sphi 0, %s36
    %s56 = sphi 0, %s56
    %s58 = sphi 0, %s56
    %s59 = sphi 0, %s58
    %s73 = sphi 0, %s59
    %s77 = sphi 0, %s77
    %s79 = sphi 0, %s77
    %s80 = sphi 0, %s79
    %s94 = sphi 0, %s80
    %s98 = sphi 0, %s98
    %s100 = sphi 0, %s98
    %s101 = sphi 0, %s100
    %s115 = sphi 0, %s101
    %s123 = sphi 0, %s125
    %s126 = sphi 0, %s123
    %s127 = sphi 0, %s126
    %s143 = sphi 0, %s127
  $region4: #{tpu_custom_call.1} parent=0 // loop_header_branch
    %13 = sbr.rel (%p11) target = $region8
  $region5: #{tpu_custom_call.1} parent=0 // loop_body
    %s15 = ssub.s32 %s10, 1
    %s16 = ssub.s32 %s10, 2
    %s23 = sadd.s32 1, %s18
    %p24 = scmp.ge.s32.totalorder %s23, 1
    %s25 = scalar_select %p24, 0, %s23
    %s26 = sadd.s32 1, %s17
    %s27 = scalar_select %p24, %s26, %s17
    %p28 = scmp.ge.s32.totalorder %s27, 2
    %s29 = scalar_select %p28, 0, %s27
    %s30 = ssub.s32 %s17, %s29
    %p31 = scmp.eq.s32.totalorder %s30, 0
    %s33 = sadd.s32 %s32, 1
    %s34 = scalar_select %p31, %s32, %s33
    %p37 = pneg %p31
    %p38 = scmp.eq.s32.totalorder %s10, 1
    %p39 = por %p37, %p38
    %p40 = scmp.ne.s32.totalorder %s32, %s35
    %p41 = scmp.eq.s32.totalorder %s10, 0
    %p42 = por %p40, %p41
    %p43 = scmp.ne.s32.totalorder %s32, %s35
    %p44 = scmp.eq.s32.totalorder %s15, 1
    %p45 = por %p43, %p44
    %p46 = scmp.ne.s32.totalorder %s35, %s36
    %p47 = scmp.eq.s32.totalorder %s15, 0
    %p48 = por %p46, %p47
    %p49 = scmp.ne.s32.totalorder %s35, %s36
    %p50 = scmp.eq.s32.totalorder %s16, 1
    %p51 = por %p49, %p50
    %p53 = scmp.ne.s32.totalorder %s36, %s52
    %p54 = scmp.eq.s32.totalorder %s16, 0
    %p55 = por %p53, %p54
    %s57 = sadd.s32 %s56, 1
    %p60 = scmp.eq.s32.totalorder %s10, 1
    %p61 = scmp.ne.s32.totalorder %s56, %s58
    %p62 = scmp.eq.s32.totalorder %s10, 0
    %p63 = por %p61, %p62
    %p64 = scmp.ne.s32.totalorder %s56, %s58
    %p65 = scmp.eq.s32.totalorder %s15, 1
    %p66 = por %p64, %p65
    %p67 = scmp.ne.s32.totalorder %s58, %s59
    %p68 = scmp.eq.s32.totalorder %s15, 0
    %p69 = por %p67, %p68
    %p70 = scmp.ne.s32.totalorder %s58, %s59
    %p71 = scmp.eq.s32.totalorder %s16, 1
    %p72 = por %p70, %p71
    %p74 = scmp.ne.s32.totalorder %s59, %s73
    %p75 = scmp.eq.s32.totalorder %s16, 0
    %p76 = por %p74, %p75
    %s78 = sadd.s32 %s77, 1
    %p81 = scmp.eq.s32.totalorder %s10, 1
    %p82 = scmp.ne.s32.totalorder %s77, %s79
    %p83 = scmp.eq.s32.totalorder %s10, 0
    %p84 = por %p82, %p83
    %p85 = scmp.ne.s32.totalorder %s77, %s79
    %p86 = scmp.eq.s32.totalorder %s15, 1
    %p87 = por %p85, %p86
    %p88 = scmp.ne.s32.totalorder %s79, %s80
    %p89 = scmp.eq.s32.totalorder %s15, 0
    %p90 = por %p88, %p89
    %p91 = scmp.ne.s32.totalorder %s79, %s80
    %p92 = scmp.eq.s32.totalorder %s16, 1
    %p93 = por %p91, %p92
    %p95 = scmp.ne.s32.totalorder %s80, %s94
    %p96 = scmp.eq.s32.totalorder %s16, 0
    %p97 = por %p95, %p96
    %s99 = sadd.s32 %s98, 1
    %p102 = scmp.eq.s32.totalorder %s10, 1
    %p103 = scmp.ne.s32.totalorder %s98, %s100
    %p104 = scmp.eq.s32.totalorder %s10, 0
    %p105 = por %p103, %p104
    %p106 = scmp.ne.s32.totalorder %s98, %s100
    %p107 = scmp.eq.s32.totalorder %s15, 1
    %p108 = por %p106, %p107
    %p109 = scmp.ne.s32.totalorder %s100, %s101
    %p110 = scmp.eq.s32.totalorder %s15, 0
    %p111 = por %p109, %p110
    %p112 = scmp.ne.s32.totalorder %s100, %s101
    %p113 = scmp.eq.s32.totalorder %s16, 1
    %p114 = por %p112, %p113
    %p116 = scmp.ne.s32.totalorder %s101, %s115
    %p117 = scmp.eq.s32.totalorder %s16, 0
    %p118 = por %p116, %p117
    %s119 = ssub.s32 %s17, %s29
    %s120 = ssub.s32 %s18, %s25
    %s121 = sor.u32 %s119, %s120
    %p122 = scmp.eq.s32.totalorder %s121, 0
    %s124 = sadd.s32 %s123, 1
    %s125 = scalar_select %p122, %s123, %s124
    %p128 = pneg %p122
    %p129 = scmp.eq.s32.totalorder %s10, 1
    %p130 = por %p128, %p129
    %p131 = scmp.ne.s32.totalorder %s123, %s126
    %p132 = scmp.eq.s32.totalorder %s10, 0
    %p133 = por %p131, %p132
    %p134 = scmp.ne.s32.totalorder %s123, %s126
    %p135 = scmp.eq.s32.totalorder %s15, 1
    %p136 = por %p134, %p135
    %p137 = scmp.ne.s32.totalorder %s126, %s127
    %p138 = scmp.eq.s32.totalorder %s15, 0
    %p139 = por %p137, %p138
    %p140 = scmp.ne.s32.totalorder %s126, %s127
    %p141 = scmp.eq.s32.totalorder %s16, 1
    %p142 = por %p140, %p141
    %p144 = scmp.ne.s32.totalorder %s127, %s143
    %p145 = scmp.eq.s32.totalorder %s16, 0
    %p146 = por %p144, %p145
    %p147 = scmp.le.s32.totalorder 1, %s10
    %p148 = scmp.lt.s32.totalorder %s10, 3
    %p149 = pnand %p147, %p148
    %p150 = pneg %p149
    // Predicated region
    $region9: #{tpu_custom_call.1} parent=5 // pred_check
      _
    $region10: #{tpu_custom_call.1} parent=5 // pred_check_branch
      %152 = sbr.rel (%p149) target = $region12
    $region11: #{tpu_custom_call.1} parent=5 // pred_region
      %s153 = ssub.s32 %s10, 1
      // Predicated region
      $region13: #{tpu_custom_call.1} parent=11 // pred_check
        %p154 = pneg %p69
      $region14: #{tpu_custom_call.1} parent=11 // pred_check_branch
        %156 = sbr.rel (%p154) target = $region16
      $region15: #{tpu_custom_call.1} parent=11 // pred_region
        _
      $region16: #{tpu_custom_call.1} parent=11 // pred_fallthru
        _
      // Predicated region
      $region17: #{tpu_custom_call.1} parent=11 // pred_check
        %p157 = pneg %p90
      $region18: #{tpu_custom_call.1} parent=11 // pred_check_branch
        %159 = sbr.rel (%p157) target = $region20
      $region19: #{tpu_custom_call.1} parent=11 // pred_region
        _
      $region20: #{tpu_custom_call.1} parent=11 // pred_fallthru
        _
      // Predicated region
      $region21: #{tpu_custom_call.1} parent=11 // pred_check
        %p160 = pneg %p111
      $region22: #{tpu_custom_call.1} parent=11 // pred_check_branch
        %162 = sbr.rel (%p160) target = $region24
      $region23: #{tpu_custom_call.1} parent=11 // pred_region
        _
      $region24: #{tpu_custom_call.1} parent=11 // pred_fallthru
        _
    $region12: #{tpu_custom_call.1} parent=5 // pred_fallthru
      _
    %p163 = scmp.lt.s32.totalorder %s10, 2
    // Predicated region
    $region25: #{tpu_custom_call.1} parent=5 // pred_check
      %p164 = pneg %p163
    $region26: #{tpu_custom_call.1} parent=5 // pred_check_branch
      %166 = sbr.rel (%p164) target = $region28
    $region27: #{tpu_custom_call.1} parent=5 // pred_region
      // Predicated region
      $region29: #{tpu_custom_call.1} parent=27 // pred_check
        %p167 = pneg %p42
      $region30: #{tpu_custom_call.1} parent=27 // pred_check_branch
        %169 = sbr.rel (%p167) target = $region32
      $region31: #{tpu_custom_call.1} parent=27 // pred_region
        %p170 = scmp.lt.s32.totalorder %s17, 1
        %s171 = scalar_select %p170, %s17, 1
        %s172 = smul.addr %s171, 28
        %s173 = smul.addr %s172, 4
        %s174 = scalar_lea.vmem %s0, %s173
      $region32: #{tpu_custom_call.1} parent=27 // pred_fallthru
        _
    $region28: #{tpu_custom_call.1} parent=5 // pred_fallthru
      _
    %p175 = scmp.le.s32.totalorder 1, %s10
    %p176 = scmp.lt.s32.totalorder %s10, 3
    %p177 = pnand %p175, %p176
    %p178 = pneg %p177
    // Predicated region
    $region33: #{tpu_custom_call.1} parent=5 // pred_check
      _
    $region34: #{tpu_custom_call.1} parent=5 // pred_check_branch
      %180 = sbr.rel (%p177) target = $region36
    $region35: #{tpu_custom_call.1} parent=5 // pred_region
      %s181 = ssub.s32 %s10, 1
      %p182 = scmp.lt.s32.totalorder %s19, 1
      %s183 = scalar_select %p182, %s19, 1
      %s184 = smul.addr %s183, 28
      %s185 = smul.addr %s184, 4
      %s186 = scalar_lea.vmem %s0, %s185
      %p187 = pneg %p48
      %p188 = pneg %p45
      %p189 = pneg %p69
      %p190 = pneg %p66
      %p191 = pneg %p90
      %p192 = pneg %p87
      %p193 = pneg %p111
      %p194 = pneg %p108
      %p195 = pneg %p139
      %p196 = pneg %p136
      %s197 = smul.u32 20, %s20
      %p198 = scmp.lt.s32.totalorder %s19, 1
      %s199 = scalar_select %p198, %s19, 1
      %p200 = scmp.lt.s32.totalorder %s197, 19
      %s201 = scalar_select %p200, %s197, 19
      %s202 = smul.addr %s199, 20
      %s203 = sadd.s32 %s201, %s202
      %s204 = smul.addr %s203, 4
      %s205 = scalar_lea.vmem %s4, %s204
      %p206 = scmp.lt.s32.totalorder %s19, 1
      %s207 = scalar_select %p206, %s19, 1
      %s208 = smul.addr %s207, 28
      %s209 = smul.addr %s208, 4
      %s210 = scalar_lea.vmem %s0, %s209
      %s211 = smul.u32 20, %s20
      %p212 = scmp.lt.s32.totalorder %s19, 1
      %s213 = scalar_select %p212, %s19, 1
      %p214 = scmp.lt.s32.totalorder %s211, 19
      %s215 = scalar_select %p214, %s211, 19
      %s216 = smul.addr %s213, 20
      %s217 = sadd.s32 %s215, %s216
      %s218 = smul.addr %s217, 4
      %s219 = scalar_lea.vmem %s4, %s218
      %s220 = smul.u32 20, %s20
      %s222 = smul.u32 %s20, 160
      %s223 = sshra.s32 %s222, 3
      %s224 = sand.u32 %s222, 7
      %s225 = smul.addr %s223, 4
      %s226 = scalar_lea.vmem %s210, %s225
      %v227 = vld [vmem:[%s226] sm:$0xf]
      %v228 = vld [vmem:[%s226 + $0x4] sm:$0xf]
      %v229 = vld [vmem:[%s226 + $0x8] sm:$0xf]
      %v230 = vld [vmem:[%s226 + $0xc] sm:$0xf]
      %v231 = vld [vmem:[%s226 + $0x10] sm:$0xf]
      %v232 = vld [vmem:[%s226 + $0x14] sm:$0xf]
      %v233 = vld [vmem:[%s226 + $0x18] sm:$0xf]
      %v234 = vld [vmem:[%s226 + $0x1c] sm:$0xf]
      %v235 = vld [vmem:[%s226 + $0x20] sm:$0xf]
      %v236 = vld [vmem:[%s226 + $0x24] sm:$0xf]
      %v237 = vld [vmem:[%s226 + $0x28] sm:$0xf]
      %v238 = vld [vmem:[%s226 + $0x2c] sm:$0xf]
      %v239 = vld [vmem:[%s226 + $0x30] sm:$0xf]
      %v240 = vld [vmem:[%s226 + $0x34] sm:$0xf]
      %v241 = vld [vmem:[%s226 + $0x38] sm:$0xf]
      %v242 = vld [vmem:[%s226 + $0x3c] sm:$0xf]
      %v243 = vld [vmem:[%s226 + $0x40] sm:$0xf]
      %v244 = vld [vmem:[%s226 + $0x44] sm:$0xf]
      %v245 = vld [vmem:[%s226 + $0x48] sm:$0xf]
      %v246 = vld [vmem:[%s226 + $0x4c] sm:$0xf]
      %v247 = vld [vmem:[%s1] sm:$0xf]
      %v248 = vld [vmem:[%s1 + $0x4] sm:$0xf]
      %v249 = vld [vmem:[%s1 + $0x8] sm:$0xf]
      %v250 = vld [vmem:[%s1 + $0xc] sm:$0xf]
      %v251 = vld [vmem:[%s1 + $0x10] sm:$0xf]
      %v252 = vld [vmem:[%s1 + $0x14] sm:$0xf]
      %s253 = smul.u32 %s20, 10
      %s254 = sadd.s32 %s253, 1
      %s255 = smul.u32 %s254, 16
      %s256 = sshra.s32 %s255, 3
      %s257 = sand.u32 %s255, 7
      %s258 = smul.addr %s256, 4
      %s259 = scalar_lea.vmem %s210, %s258
      %v260 = vld [vmem:[%s259] sm:$0xf]
      %v261 = vld [vmem:[%s259 + $0x4] sm:$0xf]
      %v262 = vld [vmem:[%s259 + $0x8] sm:$0xf]
      %v263 = vld [vmem:[%s259 + $0xc] sm:$0xf]
      %v264 = vld [vmem:[%s259 + $0x10] sm:$0xf]
      %v265 = vld [vmem:[%s259 + $0x14] sm:$0xf]
      %v266 = vld [vmem:[%s259 + $0x18] sm:$0xf]
      %v267 = vld [vmem:[%s259 + $0x1c] sm:$0xf]
      %v268 = vld [vmem:[%s259 + $0x20] sm:$0xf]
      %v269 = vld [vmem:[%s259 + $0x24] sm:$0xf]
      %v270 = vld [vmem:[%s259 + $0x28] sm:$0xf]
      %v271 = vld [vmem:[%s259 + $0x2c] sm:$0xf]
      %v272 = vld [vmem:[%s259 + $0x30] sm:$0xf]
      %v273 = vld [vmem:[%s259 + $0x34] sm:$0xf]
      %v274 = vld [vmem:[%s259 + $0x38] sm:$0xf]
      %v275 = vld [vmem:[%s259 + $0x3c] sm:$0xf]
      %v276 = vld [vmem:[%s259 + $0x40] sm:$0xf]
      %v277 = vld [vmem:[%s259 + $0x44] sm:$0xf]
      %v278 = vld [vmem:[%s259 + $0x48] sm:$0xf]
      %v279 = vld [vmem:[%s259 + $0x4c] sm:$0xf]
      %s280 = scalar_lea.vmem %s1, 24
      %v281 = vld [vmem:[%s280] sm:$0xf]
      %v282 = vld [vmem:[%s280 + $0x4] sm:$0xf]
      %v283 = vld [vmem:[%s280 + $0x8] sm:$0xf]
      %v284 = vld [vmem:[%s280 + $0xc] sm:$0xf]
      %v285 = vld [vmem:[%s280 + $0x10] sm:$0xf]
      %v286 = vld [vmem:[%s280 + $0x14] sm:$0xf]
      %v307 = vunpack.c.l.b16 %v260
      %v308 = vunpack.c.l.b16 %v261
      %v309 = vunpack.c.l.b16 %v262
      %v310 = vunpack.c.l.b16 %v263
      %v311 = vunpack.c.l.b16 %v264
      %v312 = vunpack.c.l.b16 %v265
      %v313 = vunpack.c.l.b16 %v266
      %v314 = vunpack.c.l.b16 %v267
      %v315 = vunpack.c.l.b16 %v268
      %v316 = vunpack.c.l.b16 %v269
      %v317 = vunpack.c.l.b16 %v270
      %v318 = vunpack.c.l.b16 %v271
      %v319 = vunpack.c.l.b16 %v272
      %v320 = vunpack.c.l.b16 %v273
      %v321 = vunpack.c.l.b16 %v274
      %v322 = vunpack.c.l.b16 %v275
      %v323 = vunpack.c.l.b16 %v276
      %v324 = vunpack.c.l.b16 %v277
      %v325 = vunpack.c.l.b16 %v278
      %v326 = vunpack.c.l.b16 %v279
      %v327 = vpack.c.b16 %v308, %v307
      %v328 = vpack.c.b16 %v310, %v309
      %v329 = vpack.c.b16 %v312, %v311
      %v330 = vpack.c.b16 %v314, %v313
      %v331 = vpack.c.b16 %v316, %v315
      %v332 = vpack.c.b16 %v318, %v317
      %v333 = vpack.c.b16 %v320, %v319
      %v334 = vpack.c.b16 %v322, %v321
      %v335 = vpack.c.b16 %v324, %v323
      %v336 = vpack.c.b16 %v326, %v325
      %v343 = vunpack.c.l.b16 %v281
      %v344 = vunpack.c.l.b16 %v282
      %v345 = vunpack.c.l.b16 %v283
      %v346 = vunpack.c.l.b16 %v284
      %v347 = vunpack.c.l.b16 %v285
      %v348 = vunpack.c.l.b16 %v286
      %v349 = vpack.c.b16 %v344, %v343
      %v350 = vpack.c.b16 %v346, %v345
      %v351 = vpack.c.b16 %v348, %v347
      %vm355 = vcmask 392192
      %v357 = vsel %vm355, %v327, 0
      %v360 = vsel %vm355, %v328, 0
      %v363 = vsel %vm355, %v329, 0
      %v366 = vsel %vm355, %v330, 0
      %v369 = vsel %vm355, %v331, 0
      %v372 = vsel %vm355, %v332, 0
      %v375 = vsel %vm355, %v333, 0
      %v378 = vsel %vm355, %v334, 0
      %v381 = vsel %vm355, %v335, 0
      %v384 = vsel %vm355, %v336, 0
      %386 = vmatprep.subr.bf16.mxu0 0
      %387 = vmatpush1.bf16.msra.mxu0 %v349
      %388 = vmatprep.subr.bf16.mxu0 0
      %389 = vmatpush1.bf16.msra.mxu0 %v350
      %390 = vmatprep.subr.bf16.mxu0 0
      %391 = vmatpush1.bf16.msra.mxu0 %v351
      %392 = vmatprep.subr.bf16.mxu0 0
      %393 = vmatpush1.bf16.msra.mxu0 0
      %394 = vmatprep.subr.bf16.mxu0 0
      %395 = vmatpush1.bf16.msra.mxu0 0
      %396 = vmatprep.subr.bf16.mxu0 0
      %397 = vmatpush1.bf16.msra.mxu0 0
      %398 = vmatprep.subr.bf16.mxu0 0
      %399 = vmatpush1.bf16.msra.mxu0 0
      %400 = vmatprep.subr.bf16.mxu0 0
      %401 = vmatpush1.bf16.msra.mxu0 0
      %402 = vmatprep.subr.bf16.mxu0 0
      %403 = vmatpush1.bf16.msra.mxu0 0
      %404 = vmatprep.subr.bf16.mxu0 0
      %405 = vmatpush1.bf16.msra.mxu0 0
      %406 = vmatprep.subr.bf16.mxu0 0
      %407 = vmatpush1.bf16.msra.mxu0 0
      %408 = vmatprep.subr.bf16.mxu0 0
      %409 = vmatpush1.bf16.msra.mxu0 0
      %410 = vmatprep.subr.bf16.mxu0 0
      %411 = vmatpush1.bf16.msra.mxu0 0
      %412 = vmatprep.subr.bf16.mxu0 0
      %413 = vmatpush1.bf16.msra.mxu0 0
      %414 = vmatprep.subr.bf16.mxu0 0
      %415 = vmatpush1.bf16.msra.mxu0 0
      %416 = vmatprep.subr.bf16.mxu0 0
      %417 = vmatpush1.bf16.msra.mxu0 0
      %418 = vmatprep.mubr.bf16.mxu0 0
      %419 = vmatmul.mubr.bf16.gmra.mrb[0].mxu0 %v357
      %v420 = vpop.f32.mrb[0].mxu0
      %v421 = vadd.f32 0.0, %v420
      %v422 = vpop.f32.mrb[0].mxu0
      %v423 = vpop.f32.mrb[0].mxu0
      %v424 = vadd.f32 0.0, %v423
      %v425 = vpop.f32.mrb[0].mxu0
      %426 = vmatprep.mubr.bf16.mxu0 0
      %427 = vmatmul.mubr.bf16.gmra.mrb[0].mxu0 %v360
      %v428 = vpop.f32.mrb[0].mxu0
      %v429 = vadd.f32 0.0, %v428
      %v430 = vpop.f32.mrb[0].mxu0
      %v431 = vpop.f32.mrb[0].mxu0
      %v432 = vadd.f32 0.0, %v431
      %v433 = vpop.f32.mrb[0].mxu0
      %434 = vmatprep.mubr.bf16.mxu0 0
      %435 = vmatmul.mubr.bf16.gmra.mrb[0].mxu0 %v363
      %v436 = vpop.f32.mrb[0].mxu0
      %v437 = vadd.f32 0.0, %v436
      %v438 = vpop.f32.mrb[0].mxu0
      %v439 = vpop.f32.mrb[0].mxu0
      %v440 = vadd.f32 0.0, %v439
      %v441 = vpop.f32.mrb[0].mxu0
      %442 = vmatprep.mubr.bf16.mxu0 0
      %443 = vmatmul.mubr.bf16.gmra.mrb[0].mxu0 %v366
      %v444 = vpop.f32.mrb[0].mxu0
      %v445 = vadd.f32 0.0, %v444
      %v446 = vpop.f32.mrb[0].mxu0
      %v447 = vpop.f32.mrb[0].mxu0
      %v448 = vadd.f32 0.0, %v447
      %v449 = vpop.f32.mrb[0].mxu0
      %450 = vmatprep.mubr.bf16.mxu0 0
      %451 = vmatmul.mubr.bf16.gmra.mrb[0].mxu0 %v369
      %v452 = vpop.f32.mrb[0].mxu0
      %v453 = vadd.f32 0.0, %v452
      %v454 = vpop.f32.mrb[0].mxu0
      %v455 = vpop.f32.mrb[0].mxu0
      %v456 = vadd.f32 0.0, %v455
      %v457 = vpop.f32.mrb[0].mxu0
      %458 = vmatprep.mubr.bf16.mxu0 0
      %459 = vmatmul.mubr.bf16.gmra.mrb[0].mxu0 %v372
      %v460 = vpop.f32.mrb[0].mxu0
      %v461 = vadd.f32 0.0, %v460
      %v462 = vpop.f32.mrb[0].mxu0
      %v463 = vpop.f32.mrb[0].mxu0
      %v464 = vadd.f32 0.0, %v463
      %v465 = vpop.f32.mrb[0].mxu0
      %466 = vmatprep.mubr.bf16.mxu0 0
      %467 = vmatmul.mubr.bf16.gmra.mrb[0].mxu0 %v375
      %v468 = vpop.f32.mrb[0].mxu0
      %v469 = vadd.f32 0.0, %v468
      %v470 = vpop.f32.mrb[0].mxu0
      %v471 = vpop.f32.mrb[0].mxu0
      %v472 = vadd.f32 0.0, %v471
      %v473 = vpop.f32.mrb[0].mxu0
      %474 = vmatprep.mubr.bf16.mxu0 0
      %475 = vmatmul.mubr.bf16.gmra.mrb[0].mxu0 %v378
      %v476 = vpop.f32.mrb[0].mxu0
      %v477 = vadd.f32 0.0, %v476
      %v478 = vpop.f32.mrb[0].mxu0
      %v479 = vpop.f32.mrb[0].mxu0
      %v480 = vadd.f32 0.0, %v479
      %v481 = vpop.f32.mrb[0].mxu0
      %482 = vmatprep.mubr.bf16.mxu0 0
      %483 = vmatmul.mubr.bf16.gmra.mrb[0].mxu0 %v381
      %v484 = vpop.f32.mrb[0].mxu0
      %v485 = vadd.f32 0.0, %v484
      %v486 = vpop.f32.mrb[0].mxu0
      %v487 = vpop.f32.mrb[0].mxu0
      %v488 = vadd.f32 0.0, %v487
      %v489 = vpop.f32.mrb[0].mxu0
      %490 = vmatprep.mubr.bf16.mxu0 0
      %491 = vmatmul.mubr.bf16.gmra.mrb[0].mxu0 %v384
      %v492 = vpop.f32.mrb[0].mxu0
      %v493 = vadd.f32 0.0, %v492
      %v494 = vpop.f32.mrb[0].mxu0
      %v495 = vpop.f32.mrb[0].mxu0
      %v496 = vadd.f32 0.0, %v495
      %v497 = vpop.f32.mrb[0].mxu0
      %498 = vdwg.mxu0
      %v519 = vunpack.c.l.b16 %v227
      %v520 = vunpack.c.l.b16 %v228
      %v521 = vunpack.c.l.b16 %v229
      %v522 = vunpack.c.l.b16 %v230
      %v523 = vunpack.c.l.b16 %v231
      %v524 = vunpack.c.l.b16 %v232
      %v525 = vunpack.c.l.b16 %v233
      %v526 = vunpack.c.l.b16 %v234
      %v527 = vunpack.c.l.b16 %v235
      %v528 = vunpack.c.l.b16 %v236
      %v529 = vunpack.c.l.b16 %v237
      %v530 = vunpack.c.l.b16 %v238
      %v531 = vunpack.c.l.b16 %v239
      %v532 = vunpack.c.l.b16 %v240
      %v533 = vunpack.c.l.b16 %v241
      %v534 = vunpack.c.l.b16 %v242
      %v535 = vunpack.c.l.b16 %v243
      %v536 = vunpack.c.l.b16 %v244
      %v537 = vunpack.c.l.b16 %v245
      %v538 = vunpack.c.l.b16 %v246
      %v539 = vpack.c.b16 %v520, %v519
      %v540 = vpack.c.b16 %v522, %v521
      %v541 = vpack.c.b16 %v524, %v523
      %v542 = vpack.c.b16 %v526, %v525
      %v543 = vpack.c.b16 %v528, %v527
      %v544 = vpack.c.b16 %v530, %v529
      %v545 = vpack.c.b16 %v532, %v531
      %v546 = vpack.c.b16 %v534, %v533
      %v547 = vpack.c.b16 %v536, %v535
      %v548 = vpack.c.b16 %v538, %v537
      %v555 = vunpack.c.l.b16 %v247
      %v556 = vunpack.c.l.b16 %v248
      %v557 = vunpack.c.l.b16 %v249
      %v558 = vunpack.c.l.b16 %v250
      %v559 = vunpack.c.l.b16 %v251
      %v560 = vunpack.c.l.b16 %v252
      %v561 = vpack.c.b16 %v556, %v555
      %v562 = vpack.c.b16 %v558, %v557
      %v563 = vpack.c.b16 %v560, %v559
      %v568 = vsel %vm355, %v539, 0
      %v571 = vsel %vm355, %v540, 0
      %v574 = vsel %vm355, %v541, 0
      %v577 = vsel %vm355, %v542, 0
      %v580 = vsel %vm355, %v543, 0
      %v583 = vsel %vm355, %v544, 0
      %v586 = vsel %vm355, %v545, 0
      %v589 = vsel %vm355, %v546, 0
      %v592 = vsel %vm355, %v547, 0
      %v595 = vsel %vm355, %v548, 0
      %597 = vmatprep.subr.bf16.mxu0 0
      %598 = vmatpush1.bf16.msra.mxu0 %v561
      %599 = vmatprep.subr.bf16.mxu0 0
      %600 = vmatpush1.bf16.msra.mxu0 %v562
      %601 = vmatprep.subr.bf16.mxu0 0
      %602 = vmatpush1.bf16.msra.mxu0 %v563
      %603 = vmatprep.subr.bf16.mxu0 0
      %604 = vmatpush1.bf16.msra.mxu0 0
      %605 = vmatprep.subr.bf16.mxu0 0
      %606 = vmatpush1.bf16.msra.mxu0 0
      %607 = vmatprep.subr.bf16.mxu0 0
      %608 = vmatpush1.bf16.msra.mxu0 0
      %609 = vmatprep.subr.bf16.mxu0 0
      %610 = vmatpush1.bf16.msra.mxu0 0
      %611 = vmatprep.subr.bf16.mxu0 0
      %612 = vmatpush1.bf16.msra.mxu0 0
      %613 = vmatprep.subr.bf16.mxu0 0
      %614 = vmatpush1.bf16.msra.mxu0 0
      %615 = vmatprep.subr.bf16.mxu0 0
      %616 = vmatpush1.bf16.msra.mxu0 0
      %617 = vmatprep.subr.bf16.mxu0 0
      %618 = vmatpush1.bf16.msra.mxu0 0
      %619 = vmatprep.subr.bf16.mxu0 0
      %620 = vmatpush1.bf16.msra.mxu0 0
      %621 = vmatprep.subr.bf16.mxu0 0
      %622 = vmatpush1.bf16.msra.mxu0 0
      %623 = vmatprep.subr.bf16.mxu0 0
      %624 = vmatpush1.bf16.msra.mxu0 0
      %625 = vmatprep.subr.bf16.mxu0 0
      %626 = vmatpush1.bf16.msra.mxu0 0
      %627 = vmatprep.subr.bf16.mxu0 0
      %628 = vmatpush1.bf16.msra.mxu0 0
      %629 = vmatprep.mubr.bf16.mxu0 0
      %630 = vmatmul.mubr.bf16.gmra.mrb[0].mxu0 %v568
      %v631 = vpop.f32.mrb[0].mxu0
      %v632 = vadd.f32 %v421, %v631
      %v633 = vpop.f32.mrb[0].mxu0
      %v634 = vpop.f32.mrb[0].mxu0
      %v635 = vadd.f32 %v424, %v634
      %v636 = vpop.f32.mrb[0].mxu0
      %637 = vmatprep.mubr.bf16.mxu0 0
      %638 = vmatmul.mubr.bf16.gmra.mrb[0].mxu0 %v571
      %v639 = vpop.f32.mrb[0].mxu0
      %v640 = vadd.f32 %v429, %v639
      %v641 = vpop.f32.mrb[0].mxu0
      %v642 = vpop.f32.mrb[0].mxu0
      %v643 = vadd.f32 %v432, %v642
      %v644 = vpop.f32.mrb[0].mxu0
      %645 = vmatprep.mubr.bf16.mxu0 0
      %646 = vmatmul.mubr.bf16.gmra.mrb[0].mxu0 %v574
      %v647 = vpop.f32.mrb[0].mxu0
      %v648 = vadd.f32 %v437, %v647
      %v649 = vpop.f32.mrb[0].mxu0
      %v650 = vpop.f32.mrb[0].mxu0
      %v651 = vadd.f32 %v440, %v650
      %v652 = vpop.f32.mrb[0].mxu0
      %653 = vmatprep.mubr.bf16.mxu0 0
      %654 = vmatmul.mubr.bf16.gmra.mrb[0].mxu0 %v577
      %v655 = vpop.f32.mrb[0].mxu0
      %v656 = vadd.f32 %v445, %v655
      %v657 = vpop.f32.mrb[0].mxu0
      %v658 = vpop.f32.mrb[0].mxu0
      %v659 = vadd.f32 %v448, %v658
      %v660 = vpop.f32.mrb[0].mxu0
      %661 = vmatprep.mubr.bf16.mxu0 0
      %662 = vmatmul.mubr.bf16.gmra.mrb[0].mxu0 %v580
      %v663 = vpop.f32.mrb[0].mxu0
      %v664 = vadd.f32 %v453, %v663
      %v665 = vpop.f32.mrb[0].mxu0
      %v666 = vpop.f32.mrb[0].mxu0
      %v667 = vadd.f32 %v456, %v666
      %v668 = vpop.f32.mrb[0].mxu0
      %669 = vmatprep.mubr.bf16.mxu0 0
      %670 = vmatmul.mubr.bf16.gmra.mrb[0].mxu0 %v583
      %v671 = vpop.f32.mrb[0].mxu0
      %v672 = vadd.f32 %v461, %v671
      %v673 = vpop.f32.mrb[0].mxu0
      %v674 = vpop.f32.mrb[0].mxu0
      %v675 = vadd.f32 %v464, %v674
      %v676 = vpop.f32.mrb[0].mxu0
      %677 = vmatprep.mubr.bf16.mxu0 0
      %678 = vmatmul.mubr.bf16.gmra.mrb[0].mxu0 %v586
      %v679 = vpop.f32.mrb[0].mxu0
      %v680 = vadd.f32 %v469, %v679
      %v681 = vpop.f32.mrb[0].mxu0
      %v682 = vpop.f32.mrb[0].mxu0
      %v683 = vadd.f32 %v472, %v682
      %v684 = vpop.f32.mrb[0].mxu0
      %685 = vmatprep.mubr.bf16.mxu0 0
      %686 = vmatmul.mubr.bf16.gmra.mrb[0].mxu0 %v589
      %v687 = vpop.f32.mrb[0].mxu0
      %v688 = vadd.f32 %v477, %v687
      %v689 = vpop.f32.mrb[0].mxu0
      %v690 = vpop.f32.mrb[0].mxu0
      %v691 = vadd.f32 %v480, %v690
      %v692 = vpop.f32.mrb[0].mxu0
      %693 = vmatprep.mubr.bf16.mxu0 0
      %694 = vmatmul.mubr.bf16.gmra.mrb[0].mxu0 %v592
      %v695 = vpop.f32.mrb[0].mxu0
      %v696 = vadd.f32 %v485, %v695
      %v697 = vpop.f32.mrb[0].mxu0
      %v698 = vpop.f32.mrb[0].mxu0
      %v699 = vadd.f32 %v488, %v698
      %v700 = vpop.f32.mrb[0].mxu0
      %701 = vmatprep.mubr.bf16.mxu0 0
      %702 = vmatmul.mubr.bf16.gmra.mrb[0].mxu0 %v595
      %v703 = vpop.f32.mrb[0].mxu0
      %v704 = vadd.f32 %v493, %v703
      %v705 = vpop.f32.mrb[0].mxu0
      %v706 = vpop.f32.mrb[0].mxu0
      %v707 = vadd.f32 %v496, %v706
      %v708 = vpop.f32.mrb[0].mxu0
      %709 = vdwg.mxu0
      %s710 = sadd.s32 %s253, 2
      %s711 = smul.u32 %s710, 16
      %s712 = sshra.s32 %s711, 3
      %s713 = sand.u32 %s711, 7
      %s714 = smul.addr %s712, 4
      %s715 = scalar_lea.vmem %s210, %s714
      %v716 = vld [vmem:[%s715] sm:$0xf]
      %v717 = vld [vmem:[%s715 + $0x4] sm:$0xf]
      %v718 = vld [vmem:[%s715 + $0x8] sm:$0xf]
      %v719 = vld [vmem:[%s715 + $0xc] sm:$0xf]
      %v720 = vld [vmem:[%s715 + $0x10] sm:$0xf]
      %v721 = vld [vmem:[%s715 + $0x14] sm:$0xf]
      %v722 = vld [vmem:[%s715 + $0x18] sm:$0xf]
      %v723 = vld [vmem:[%s715 + $0x1c] sm:$0xf]
      %v724 = vld [vmem:[%s715 + $0x20] sm:$0xf]
      %v725 = vld [vmem:[%s715 + $0x24] sm:$0xf]
      %v726 = vld [vmem:[%s715 + $0x28] sm:$0xf]
      %v727 = vld [vmem:[%s715 + $0x2c] sm:$0xf]
      %v728 = vld [vmem:[%s715 + $0x30] sm:$0xf]
      %v729 = vld [vmem:[%s715 + $0x34] sm:$0xf]
      %v730 = vld [vmem:[%s715 + $0x38] sm:$0xf]
      %v731 = vld [vmem:[%s715 + $0x3c] sm:$0xf]
      %v732 = vld [vmem:[%s715 + $0x40] sm:$0xf]
      %v733 = vld [vmem:[%s715 + $0x44] sm:$0xf]
      %v734 = vld [vmem:[%s715 + $0x48] sm:$0xf]
      %v735 = vld [vmem:[%s715 + $0x4c] sm:$0xf]
      %s736 = scalar_lea.vmem %s1, 48
      %v737 = vld [vmem:[%s736] sm:$0xf]
      %v738 = vld [vmem:[%s736 + $0x4] sm:$0xf]
      %v739 = vld [vmem:[%s736 + $0x8] sm:$0xf]
      %v740 = vld [vmem:[%s736 + $0xc] sm:$0xf]
      %v741 = vld [vmem:[%s736 + $0x10] sm:$0xf]
      %v742 = vld [vmem:[%s736 + $0x14] sm:$0xf]
      %v763 = vunpack.c.l.b16 %v716
      %v764 = vunpack.c.l.b16 %v717
      %v765 = vunpack.c.l.b16 %v718
      %v766 = vunpack.c.l.b16 %v719
      %v767 = vunpack.c.l.b16 %v720
      %v768 = vunpack.c.l.b16 %v721
      %v769 = vunpack.c.l.b16 %v722
      %v770 = vunpack.c.l.b16 %v723
      %v771 = vunpack.c.l.b16 %v724
      %v772 = vunpack.c.l.b16 %v725
      %v773 = vunpack.c.l.b16 %v726
      %v774 = vunpack.c.l.b16 %v727
      %v775 = vunpack.c.l.b16 %v728
      %v776 = vunpack.c.l.b16 %v729
      %v777 = vunpack.c.l.b16 %v730
      %v778 = vunpack.c.l.b16 %v731
      %v779 = vunpack.c.l.b16 %v732
      %v780 = vunpack.c.l.b16 %v733
      %v781 = vunpack.c.l.b16 %v734
      %v782 = vunpack.c.l.b16 %v735
      %v783 = vpack.c.b16 %v764, %v763
      %v784 = vpack.c.b16 %v766, %v765
      %v785 = vpack.c.b16 %v768, %v767
      %v786 = vpack.c.b16 %v770, %v769
      %v787 = vpack.c.b16 %v772, %v771
      %v788 = vpack.c.b16 %v774, %v773
      %v789 = vpack.c.b16 %v776, %v775
      %v790 = vpack.c.b16 %v778, %v777
      %v791 = vpack.c.b16 %v780, %v779
      %v792 = vpack.c.b16 %v782, %v781
      %v799 = vunpack.c.l.b16 %v737
      %v800 = vunpack.c.l.b16 %v738
      %v801 = vunpack.c.l.b16 %v739
      %v802 = vunpack.c.l.b16 %v740
      %v803 = vunpack.c.l.b16 %v741
      %v804 = vunpack.c.l.b16 %v742
      %v805 = vpack.c.b16 %v800, %v799
      %v806 = vpack.c.b16 %v802, %v801
      %v807 = vpack.c.b16 %v804, %v803
      %v812 = vsel %vm355, %v783, 0
      %v815 = vsel %vm355, %v784, 0
      %v818 = vsel %vm355, %v785, 0
      %v821 = vsel %vm355, %v786, 0
      %v824 = vsel %vm355, %v787, 0
      %v827 = vsel %vm355, %v788, 0
      %v830 = vsel %vm355, %v789, 0
      %v833 = vsel %vm355, %v790, 0
      %v836 = vsel %vm355, %v791, 0
      %v839 = vsel %vm355, %v792, 0
      %841 = vmatprep.subr.bf16.mxu0 0
      %842 = vmatpush1.bf16.msra.mxu0 %v805
      %843 = vmatprep.subr.bf16.mxu0 0
      %844 = vmatpush1.bf16.msra.mxu0 %v806
      %845 = vmatprep.subr.bf16.mxu0 0
      %846 = vmatpush1.bf16.msra.mxu0 %v807
      %847 = vmatprep.subr.bf16.mxu0 0
      %848 = vmatpush1.bf16.msra.mxu0 0
      %849 = vmatprep.subr.bf16.mxu0 0
      %850 = vmatpush1.bf16.msra.mxu0 0
      %851 = vmatprep.subr.bf16.mxu0 0
      %852 = vmatpush1.bf16.msra.mxu0 0
      %853 = vmatprep.subr.bf16.mxu0 0
      %854 = vmatpush1.bf16.msra.mxu0 0
      %855 = vmatprep.subr.bf16.mxu0 0
      %856 = vmatpush1.bf16.msra.mxu0 0
      %857 = vmatprep.subr.bf16.mxu0 0
      %858 = vmatpush1.bf16.msra.mxu0 0
      %859 = vmatprep.subr.bf16.mxu0 0
      %860 = vmatpush1.bf16.msra.mxu0 0
      %861 = vmatprep.subr.bf16.mxu0 0
      %862 = vmatpush1.bf16.msra.mxu0 0
      %863 = vmatprep.subr.bf16.mxu0 0
      %864 = vmatpush1.bf16.msra.mxu0 0
      %865 = vmatprep.subr.bf16.mxu0 0
      %866 = vmatpush1.bf16.msra.mxu0 0
      %867 = vmatprep.subr.bf16.mxu0 0
      %868 = vmatpush1.bf16.msra.mxu0 0
      %869 = vmatprep.subr.bf16.mxu0 0
      %870 = vmatpush1.bf16.msra.mxu0 0
      %871 = vmatprep.subr.bf16.mxu0 0
      %872 = vmatpush1.bf16.msra.mxu0 0
      %873 = vmatprep.mubr.bf16.mxu0 0
      %874 = vmatmul.mubr.bf16.gmra.mrb[0].mxu0 %v812
      %v875 = vpop.f32.mrb[0].mxu0
      %v876 = vadd.f32 0.0, %v875
      %v877 = vpop.f32.mrb[0].mxu0
      %v878 = vpop.f32.mrb[0].mxu0
      %v879 = vadd.f32 0.0, %v878
      %v880 = vpop.f32.mrb[0].mxu0
      %881 = vmatprep.mubr.bf16.mxu0 0
      %882 = vmatmul.mubr.bf16.gmra.mrb[0].mxu0 %v815
      %v883 = vpop.f32.mrb[0].mxu0
      %v884 = vadd.f32 0.0, %v883
      %v885 = vpop.f32.mrb[0].mxu0
      %v886 = vpop.f32.mrb[0].mxu0
      %v887 = vadd.f32 0.0, %v886
      %v888 = vpop.f32.mrb[0].mxu0
      %889 = vmatprep.mubr.bf16.mxu0 0
      %890 = vmatmul.mubr.bf16.gmra.mrb[0].mxu0 %v818
      %v891 = vpop.f32.mrb[0].mxu0
      %v892 = vadd.f32 0.0, %v891
      %v893 = vpop.f32.mrb[0].mxu0
      %v894 = vpop.f32.mrb[0].mxu0
      %v895 = vadd.f32 0.0, %v894
      %v896 = vpop.f32.mrb[0].mxu0
      %897 = vmatprep.mubr.bf16.mxu0 0
      %898 = vmatmul.mubr.bf16.gmra.mrb[0].mxu0 %v821
      %v899 = vpop.f32.mrb[0].mxu0
      %v900 = vadd.f32 0.0, %v899
      %v901 = vpop.f32.mrb[0].mxu0
      %v902 = vpop.f32.mrb[0].mxu0
      %v903 = vadd.f32 0.0, %v902
      %v904 = vpop.f32.mrb[0].mxu0
      %905 = vmatprep.mubr.bf16.mxu0 0
      %906 = vmatmul.mubr.bf16.gmra.mrb[0].mxu0 %v824
      %v907 = vpop.f32.mrb[0].mxu0
      %v908 = vadd.f32 0.0, %v907
      %v909 = vpop.f32.mrb[0].mxu0
      %v910 = vpop.f32.mrb[0].mxu0
      %v911 = vadd.f32 0.0, %v910
      %v912 = vpop.f32.mrb[0].mxu0
      %913 = vmatprep.mubr.bf16.mxu0 0
      %914 = vmatmul.mubr.bf16.gmra.mrb[0].mxu0 %v827
      %v915 = vpop.f32.mrb[0].mxu0
      %v916 = vadd.f32 0.0, %v915
      %v917 = vpop.f32.mrb[0].mxu0
      %v918 = vpop.f32.mrb[0].mxu0
      %v919 = vadd.f32 0.0, %v918
      %v920 = vpop.f32.mrb[0].mxu0
      %921 = vmatprep.mubr.bf16.mxu0 0
      %922 = vmatmul.mubr.bf16.gmra.mrb[0].mxu0 %v830
      %v923 = vpop.f32.mrb[0].mxu0
      %v924 = vadd.f32 0.0, %v923
      %v925 = vpop.f32.mrb[0].mxu0
      %v926 = vpop.f32.mrb[0].mxu0
      %v927 = vadd.f32 0.0, %v926
      %v928 = vpop.f32.mrb[0].mxu0
      %929 = vmatprep.mubr.bf16.mxu0 0
      %930 = vmatmul.mubr.bf16.gmra.mrb[0].mxu0 %v833
      %v931 = vpop.f32.mrb[0].mxu0
      %v932 = vadd.f32 0.0, %v931
      %v933 = vpop.f32.mrb[0].mxu0
      %v934 = vpop.f32.mrb[0].mxu0
      %v935 = vadd.f32 0.0, %v934
      %v936 = vpop.f32.mrb[0].mxu0
      %937 = vmatprep.mubr.bf16.mxu0 0
      %938 = vmatmul.mubr.bf16.gmra.mrb[0].mxu0 %v836
      %v939 = vpop.f32.mrb[0].mxu0
      %v940 = vadd.f32 0.0, %v939
      %v941 = vpop.f32.mrb[0].mxu0
      %v942 = vpop.f32.mrb[0].mxu0
      %v943 = vadd.f32 0.0, %v942
      %v944 = vpop.f32.mrb[0].mxu0
      %945 = vmatprep.mubr.bf16.mxu0 0
      %946 = vmatmul.mubr.bf16.gmra.mrb[0].mxu0 %v839
      %v947 = vpop.f32.mrb[0].mxu0
      %v948 = vadd.f32 0.0, %v947
      %v949 = vpop.f32.mrb[0].mxu0
      %v950 = vpop.f32.mrb[0].mxu0
      %v951 = vadd.f32 0.0, %v950
      %v952 = vpop.f32.mrb[0].mxu0
      %953 = vdwg.mxu0
      %v954 = vadd.f32 %v632, %v876
      %v955 = vadd.f32 %v635, %v879
      %v956 = vadd.f32 %v640, %v884
      %v957 = vadd.f32 %v643, %v887
      %v958 = vadd.f32 %v648, %v892
      %v959 = vadd.f32 %v651, %v895
      %v960 = vadd.f32 %v656, %v900
      %v961 = vadd.f32 %v659, %v903
      %v962 = vadd.f32 %v664, %v908
      %v963 = vadd.f32 %v667, %v911
      %v964 = vadd.f32 %v672, %v916
      %v965 = vadd.f32 %v675, %v919
      %v966 = vadd.f32 %v680, %v924
      %v967 = vadd.f32 %v683, %v927
      %v968 = vadd.f32 %v688, %v932
      %v969 = vadd.f32 %v691, %v935
      %v970 = vadd.f32 %v696, %v940
      %v971 = vadd.f32 %v699, %v943
      %v972 = vadd.f32 %v704, %v948
      %v973 = vadd.f32 %v707, %v951
      %s974 = sadd.s32 %s253, 3
      %s975 = smul.u32 %s974, 16
      %s976 = sshra.s32 %s975, 3
      %s977 = sand.u32 %s975, 7
      %s978 = smul.addr %s976, 4
      %s979 = scalar_lea.vmem %s210, %s978
      %v980 = vld [vmem:[%s979] sm:$0xf]
      %v981 = vld [vmem:[%s979 + $0x4] sm:$0xf]
      %v982 = vld [vmem:[%s979 + $0x8] sm:$0xf]
      %v983 = vld [vmem:[%s979 + $0xc] sm:$0xf]
      %v984 = vld [vmem:[%s979 + $0x10] sm:$0xf]
      %v985 = vld [vmem:[%s979 + $0x14] sm:$0xf]
      %v986 = vld [vmem:[%s979 + $0x18] sm:$0xf]
      %v987 = vld [vmem:[%s979 + $0x1c] sm:$0xf]
      %v988 = vld [vmem:[%s979 + $0x20] sm:$0xf]
      %v989 = vld [vmem:[%s979 + $0x24] sm:$0xf]
      %v990 = vld [vmem:[%s979 + $0x28] sm:$0xf]
      %v991 = vld [vmem:[%s979 + $0x2c] sm:$0xf]
      %v992 = vld [vmem:[%s979 + $0x30] sm:$0xf]
      %v993 = vld [vmem:[%s979 + $0x34] sm:$0xf]
      %v994 = vld [vmem:[%s979 + $0x38] sm:$0xf]
      %v995 = vld [vmem:[%s979 + $0x3c] sm:$0xf]
      %v996 = vld [vmem:[%s979 + $0x40] sm:$0xf]
      %v997 = vld [vmem:[%s979 + $0x44] sm:$0xf]
      %v998 = vld [vmem:[%s979 + $0x48] sm:$0xf]
      %v999 = vld [vmem:[%s979 + $0x4c] sm:$0xf]
      %s1000 = scalar_lea.vmem %s1, 72
      %v1001 = vld [vmem:[%s1000] sm:$0xf]
      %v1002 = vld [vmem:[%s1000 + $0x4] sm:$0xf]
      %v1003 = vld [vmem:[%s1000 + $0x8] sm:$0xf]
      %v1004 = vld [vmem:[%s1000 + $0xc] sm:$0xf]
      %v1005 = vld [vmem:[%s1000 + $0x10] sm:$0xf]
      %v1006 = vld [vmem:[%s1000 + $0x14] sm:$0xf]
      %v1027 = vunpack.c.l.b16 %v980
      %v1028 = vunpack.c.l.b16 %v981
      %v1029 = vunpack.c.l.b16 %v982
      %v1030 = vunpack.c.l.b16 %v983
      %v1031 = vunpack.c.l.b16 %v984
      %v1032 = vunpack.c.l.b16 %v985
      %v1033 = vunpack.c.l.b16 %v986
      %v1034 = vunpack.c.l.b16 %v987
      %v1035 = vunpack.c.l.b16 %v988
      %v1036 = vunpack.c.l.b16 %v989
      %v1037 = vunpack.c.l.b16 %v990
      %v1038 = vunpack.c.l.b16 %v991
      %v1039 = vunpack.c.l.b16 %v992
      %v1040 = vunpack.c.l.b16 %v993
      %v1041 = vunpack.c.l.b16 %v994
      %v1042 = vunpack.c.l.b16 %v995
      %v1043 = vunpack.c.l.b16 %v996
      %v1044 = vunpack.c.l.b16 %v997
      %v1045 = vunpack.c.l.b16 %v998
      %v1046 = vunpack.c.l.b16 %v999
      %v1047 = vpack.c.b16 %v1028, %v1027
      %v1048 = vpack.c.b16 %v1030, %v1029
      %v1049 = vpack.c.b16 %v1032, %v1031
      %v1050 = vpack.c.b16 %v1034, %v1033
      %v1051 = vpack.c.b16 %v1036, %v1035
      %v1052 = vpack.c.b16 %v1038, %v1037
      %v1053 = vpack.c.b16 %v1040, %v1039
      %v1054 = vpack.c.b16 %v1042, %v1041
      %v1055 = vpack.c.b16 %v1044, %v1043
      %v1056 = vpack.c.b16 %v1046, %v1045
      %v1063 = vunpack.c.l.b16 %v1001
      %v1064 = vunpack.c.l.b16 %v1002
      %v1065 = vunpack.c.l.b16 %v1003
      %v1066 = vunpack.c.l.b16 %v1004
      %v1067 = vunpack.c.l.b16 %v1005
      %v1068 = vunpack.c.l.b16 %v1006
      %v1069 = vpack.c.b16 %v1064, %v1063
      %v1070 = vpack.c.b16 %v1066, %v1065
      %v1071 = vpack.c.b16 %v1068, %v1067
      %v1076 = vsel %vm355, %v1047, 0
      %v1079 = vsel %vm355, %v1048, 0
      %v1082 = vsel %vm355, %v1049, 0
      %v1085 = vsel %vm355, %v1050, 0
      %v1088 = vsel %vm355, %v1051, 0
      %v1091 = vsel %vm355, %v1052, 0
      %v1094 = vsel %vm355, %v1053, 0
      %v1097 = vsel %vm355, %v1054, 0
      %v1100 = vsel %vm355, %v1055, 0
      %v1103 = vsel %vm355, %v1056, 0
      %1105 = vmatprep.subr.bf16.mxu0 0
      %1106 = vmatpush1.bf16.msra.mxu0 %v1069
      %1107 = vmatprep.subr.bf16.mxu0 0
      %1108 = vmatpush1.bf16.msra.mxu0 %v1070
      %1109 = vmatprep.subr.bf16.mxu0 0
      %1110 = vmatpush1.bf16.msra.mxu0 %v1071
      %1111 = vmatprep.subr.bf16.mxu0 0
      %1112 = vmatpush1.bf16.msra.mxu0 0
      %1113 = vmatprep.subr.bf16.mxu0 0
      %1114 = vmatpush1.bf16.msra.mxu0 0
      %1115 = vmatprep.subr.bf16.mxu0 0
      %1116 = vmatpush1.bf16.msra.mxu0 0
      %1117 = vmatprep.subr.bf16.mxu0 0
      %1118 = vmatpush1.bf16.msra.mxu0 0
      %1119 = vmatprep.subr.bf16.mxu0 0
      %1120 = vmatpush1.bf16.msra.mxu0 0
      %1121 = vmatprep.subr.bf16.mxu0 0
      %1122 = vmatpush1.bf16.msra.mxu0 0
      %1123 = vmatprep.subr.bf16.mxu0 0
      %1124 = vmatpush1.bf16.msra.mxu0 0
      %1125 = vmatprep.subr.bf16.mxu0 0
      %1126 = vmatpush1.bf16.msra.mxu0 0
      %1127 = vmatprep.subr.bf16.mxu0 0
      %1128 = vmatpush1.bf16.msra.mxu0 0
      %1129 = vmatprep.subr.bf16.mxu0 0
      %1130 = vmatpush1.bf16.msra.mxu0 0
      %1131 = vmatprep.subr.bf16.mxu0 0
      %1132 = vmatpush1.bf16.msra.mxu0 0
      %1133 = vmatprep.subr.bf16.mxu0 0
      %1134 = vmatpush1.bf16.msra.mxu0 0
      %1135 = vmatprep.subr.bf16.mxu0 0
      %1136 = vmatpush1.bf16.msra.mxu0 0
      %1137 = vmatprep.mubr.bf16.mxu0 0
      %1138 = vmatmul.mubr.bf16.gmra.mrb[0].mxu0 %v1076
      %v1139 = vpop.f32.mrb[0].mxu0
      %v1140 = vadd.f32 0.0, %v1139
      %v1141 = vpop.f32.mrb[0].mxu0
      %v1142 = vpop.f32.mrb[0].mxu0
      %v1143 = vadd.f32 0.0, %v1142
      %v1144 = vpop.f32.mrb[0].mxu0
      %1145 = vmatprep.mubr.bf16.mxu0 0
      %1146 = vmatmul.mubr.bf16.gmra.mrb[0].mxu0 %v1079
      %v1147 = vpop.f32.mrb[0].mxu0
      %v1148 = vadd.f32 0.0, %v1147
      %v1149 = vpop.f32.mrb[0].mxu0
      %v1150 = vpop.f32.mrb[0].mxu0
      %v1151 = vadd.f32 0.0, %v1150
      %v1152 = vpop.f32.mrb[0].mxu0
      %1153 = vmatprep.mubr.bf16.mxu0 0
      %1154 = vmatmul.mubr.bf16.gmra.mrb[0].mxu0 %v1082
      %v1155 = vpop.f32.mrb[0].mxu0
      %v1156 = vadd.f32 0.0, %v1155
      %v1157 = vpop.f32.mrb[0].mxu0
      %v1158 = vpop.f32.mrb[0].mxu0
      %v1159 = vadd.f32 0.0, %v1158
      %v1160 = vpop.f32.mrb[0].mxu0
      %1161 = vmatprep.mubr.bf16.mxu0 0
      %1162 = vmatmul.mubr.bf16.gmra.mrb[0].mxu0 %v1085
      %v1163 = vpop.f32.mrb[0].mxu0
      %v1164 = vadd.f32 0.0, %v1163
      %v1165 = vpop.f32.mrb[0].mxu0
      %v1166 = vpop.f32.mrb[0].mxu0
      %v1167 = vadd.f32 0.0, %v1166
      %v1168 = vpop.f32.mrb[0].mxu0
      %1169 = vmatprep.mubr.bf16.mxu0 0
      %1170 = vmatmul.mubr.bf16.gmra.mrb[0].mxu0 %v1088
      %v1171 = vpop.f32.mrb[0].mxu0
      %v1172 = vadd.f32 0.0, %v1171
      %v1173 = vpop.f32.mrb[0].mxu0
      %v1174 = vpop.f32.mrb[0].mxu0
      %v1175 = vadd.f32 0.0, %v1174
      %v1176 = vpop.f32.mrb[0].mxu0
      %1177 = vmatprep.mubr.bf16.mxu0 0
      %1178 = vmatmul.mubr.bf16.gmra.mrb[0].mxu0 %v1091
      %v1179 = vpop.f32.mrb[0].mxu0
      %v1180 = vadd.f32 0.0, %v1179
      %v1181 = vpop.f32.mrb[0].mxu0
      %v1182 = vpop.f32.mrb[0].mxu0
      %v1183 = vadd.f32 0.0, %v1182
      %v1184 = vpop.f32.mrb[0].mxu0
      %1185 = vmatprep.mubr.bf16.mxu0 0
      %1186 = vmatmul.mubr.bf16.gmra.mrb[0].mxu0 %v1094
      %v1187 = vpop.f32.mrb[0].mxu0
      %v1188 = vadd.f32 0.0, %v1187
      %v1189 = vpop.f32.mrb[0].mxu0
      %v1190 = vpop.f32.mrb[0].mxu0
      %v1191 = vadd.f32 0.0, %v1190
      %v1192 = vpop.f32.mrb[0].mxu0
      %1193 = vmatprep.mubr.bf16.mxu0 0
      %1194 = vmatmul.mubr.bf16.gmra.mrb[0].mxu0 %v1097
      %v1195 = vpop.f32.mrb[0].mxu0
      %v1196 = vadd.f32 0.0, %v1195
      %v1197 = vpop.f32.mrb[0].mxu0
      %v1198 = vpop.f32.mrb[0].mxu0
      %v1199 = vadd.f32 0.0, %v1198
      %v1200 = vpop.f32.mrb[0].mxu0
      %1201 = vmatprep.mubr.bf16.mxu0 0
      %1202 = vmatmul.mubr.bf16.gmra.mrb[0].mxu0 %v1100
      %v1203 = vpop.f32.mrb[0].mxu0
      %v1204 = vadd.f32 0.0, %v1203
      %v1205 = vpop.f32.mrb[0].mxu0
      %v1206 = vpop.f32.mrb[0].mxu0
      %v1207 = vadd.f32 0.0, %v1206
      %v1208 = vpop.f32.mrb[0].mxu0
      %1209 = vmatprep.mubr.bf16.mxu0 0
      %1210 = vmatmul.mubr.bf16.gmra.mrb[0].mxu0 %v1103
      %v1211 = vpop.f32.mrb[0].mxu0
      %v1212 = vadd.f32 0.0, %v1211
      %v1213 = vpop.f32.mrb[0].mxu0
      %v1214 = vpop.f32.mrb[0].mxu0
      %v1215 = vadd.f32 0.0, %v1214
      %v1216 = vpop.f32.mrb[0].mxu0
      %1217 = vdwg.mxu0
      %v1218 = vadd.f32 %v954, %v1140
      %v1219 = vadd.f32 %v955, %v1143
      %v1220 = vadd.f32 %v956, %v1148
      %v1221 = vadd.f32 %v957, %v1151
      %v1222 = vadd.f32 %v958, %v1156
      %v1223 = vadd.f32 %v959, %v1159
      %v1224 = vadd.f32 %v960, %v1164
      %v1225 = vadd.f32 %v961, %v1167
      %v1226 = vadd.f32 %v962, %v1172
      %v1227 = vadd.f32 %v963, %v1175
      %v1228 = vadd.f32 %v964, %v1180
      %v1229 = vadd.f32 %v965, %v1183
      %v1230 = vadd.f32 %v966, %v1188
      %v1231 = vadd.f32 %v967, %v1191
      %v1232 = vadd.f32 %v968, %v1196
      %v1233 = vadd.f32 %v969, %v1199
      %v1234 = vadd.f32 %v970, %v1204
      %v1235 = vadd.f32 %v971, %v1207
      %v1236 = vadd.f32 %v972, %v1212
      %v1237 = vadd.f32 %v973, %v1215
      %v1238 = vld [vmem:[%s2] sm:$0x1]
      %v1240 = vlaneseq
      %v1241 = vshrl.u32 %v1240, 7
      %v1242 = vsub.s32 0, %v1241
      %v1243 = vrot.slane %v1238, %v1242
      %v1245 = vmul.f32 %v1218, %v1243
      %v1246 = vmul.f32 %v1219, %v1243
      %v1247 = vmul.f32 %v1220, %v1243
      %v1248 = vmul.f32 %v1221, %v1243
      %v1249 = vmul.f32 %v1222, %v1243
      %v1250 = vmul.f32 %v1223, %v1243
      %v1251 = vmul.f32 %v1224, %v1243
      %v1252 = vmul.f32 %v1225, %v1243
      %v1253 = vmul.f32 %v1226, %v1243
      %v1254 = vmul.f32 %v1227, %v1243
      %v1255 = vmul.f32 %v1228, %v1243
      %v1256 = vmul.f32 %v1229, %v1243
      %v1257 = vmul.f32 %v1230, %v1243
      %v1258 = vmul.f32 %v1231, %v1243
      %v1259 = vmul.f32 %v1232, %v1243
      %v1260 = vmul.f32 %v1233, %v1243
      %v1261 = vmul.f32 %v1234, %v1243
      %v1262 = vmul.f32 %v1235, %v1243
      %v1263 = vmul.f32 %v1236, %v1243
      %v1264 = vmul.f32 %v1237, %v1243
      %v1265 = vld [vmem:[%s3] sm:$0x1]
      %v1267 = vlaneseq
      %v1268 = vshrl.u32 %v1267, 7
      %v1269 = vsub.s32 0, %v1268
      %v1270 = vrot.slane %v1265, %v1269
      %v1272 = vadd.f32 %v1245, %v1270
      %v1273 = vadd.f32 %v1246, %v1270
      %v1274 = vadd.f32 %v1247, %v1270
      %v1275 = vadd.f32 %v1248, %v1270
      %v1276 = vadd.f32 %v1249, %v1270
      %v1277 = vadd.f32 %v1250, %v1270
      %v1278 = vadd.f32 %v1251, %v1270
      %v1279 = vadd.f32 %v1252, %v1270
      %v1280 = vadd.f32 %v1253, %v1270
      %v1281 = vadd.f32 %v1254, %v1270
      %v1282 = vadd.f32 %v1255, %v1270
      %v1283 = vadd.f32 %v1256, %v1270
      %v1284 = vadd.f32 %v1257, %v1270
      %v1285 = vadd.f32 %v1258, %v1270
      %v1286 = vadd.f32 %v1259, %v1270
      %v1287 = vadd.f32 %v1260, %v1270
      %v1288 = vadd.f32 %v1261, %v1270
      %v1289 = vadd.f32 %v1262, %v1270
      %v1290 = vadd.f32 %v1263, %v1270
      %v1291 = vadd.f32 %v1264, %v1270
      %v1292 = vmax.f32 %v1272, 0.0
      %v1293 = vmax.f32 %v1273, 0.0
      %v1294 = vmax.f32 %v1274, 0.0
      %v1295 = vmax.f32 %v1275, 0.0
      %v1296 = vmax.f32 %v1276, 0.0
      %v1297 = vmax.f32 %v1277, 0.0
      %v1298 = vmax.f32 %v1278, 0.0
      %v1299 = vmax.f32 %v1279, 0.0
      %v1300 = vmax.f32 %v1280, 0.0
      %v1301 = vmax.f32 %v1281, 0.0
      %v1302 = vmax.f32 %v1282, 0.0
      %v1303 = vmax.f32 %v1283, 0.0
      %v1304 = vmax.f32 %v1284, 0.0
      %v1305 = vmax.f32 %v1285, 0.0
      %v1306 = vmax.f32 %v1286, 0.0
      %v1307 = vmax.f32 %v1287, 0.0
      %v1308 = vmax.f32 %v1288, 0.0
      %v1309 = vmax.f32 %v1289, 0.0
      %v1310 = vmax.f32 %v1290, 0.0
      %v1311 = vmax.f32 %v1291, 0.0
      %v1312 = vpack.c.bf16 %v1293, %v1292
      %v1313 = vpack.c.bf16 %v1295, %v1294
      %v1314 = vpack.c.bf16 %v1297, %v1296
      %v1315 = vpack.c.bf16 %v1299, %v1298
      %v1316 = vpack.c.bf16 %v1301, %v1300
      %v1317 = vpack.c.bf16 %v1303, %v1302
      %v1318 = vpack.c.bf16 %v1305, %v1304
      %v1319 = vpack.c.bf16 %v1307, %v1306
      %v1320 = vpack.c.bf16 %v1309, %v1308
      %v1321 = vpack.c.bf16 %v1311, %v1310
      %v1332 = vunpack.c.l.b16 %v1312
      %v1333 = vunpack.c.h.b16 %v1312
      %v1334 = vunpack.c.l.b16 %v1313
      %v1335 = vunpack.c.h.b16 %v1313
      %v1336 = vunpack.c.l.b16 %v1314
      %v1337 = vunpack.c.h.b16 %v1314
      %v1338 = vunpack.c.l.b16 %v1315
      %v1339 = vunpack.c.h.b16 %v1315
      %v1340 = vunpack.c.l.b16 %v1316
      %v1341 = vunpack.c.h.b16 %v1316
      %v1342 = vunpack.c.l.b16 %v1317
      %v1343 = vunpack.c.h.b16 %v1317
      %v1344 = vunpack.c.l.b16 %v1318
      %v1345 = vunpack.c.h.b16 %v1318
      %v1346 = vunpack.c.l.b16 %v1319
      %v1347 = vunpack.c.h.b16 %v1319
      %v1348 = vunpack.c.l.b16 %v1320
      %v1349 = vunpack.c.h.b16 %v1320
      %v1350 = vunpack.c.l.b16 %v1321
      %v1351 = vunpack.c.h.b16 %v1321
      %v1352 = vpack.c.b16 %v1332, %v1332
      %v1353 = vpack.c.b16 %v1333, %v1333
      %v1354 = vpack.c.b16 %v1334, %v1334
      %v1355 = vpack.c.b16 %v1335, %v1335
      %v1356 = vpack.c.b16 %v1336, %v1336
      %v1357 = vpack.c.b16 %v1337, %v1337
      %v1358 = vpack.c.b16 %v1338, %v1338
      %v1359 = vpack.c.b16 %v1339, %v1339
      %v1360 = vpack.c.b16 %v1340, %v1340
      %v1361 = vpack.c.b16 %v1341, %v1341
      %v1362 = vpack.c.b16 %v1342, %v1342
      %v1363 = vpack.c.b16 %v1343, %v1343
      %v1364 = vpack.c.b16 %v1344, %v1344
      %v1365 = vpack.c.b16 %v1345, %v1345
      %v1366 = vpack.c.b16 %v1346, %v1346
      %v1367 = vpack.c.b16 %v1347, %v1347
      %v1368 = vpack.c.b16 %v1348, %v1348
      %v1369 = vpack.c.b16 %v1349, %v1349
      %v1370 = vpack.c.b16 %v1350, %v1350
      %v1371 = vpack.c.b16 %v1351, %v1351
      %vm1392 = vcmask 519168
      %1393 = vst.msk [vmem:[%s219] sm:$0xf] %vm1392, %v1352
      %1394 = vst.msk [vmem:[%s219 + $0x4] sm:$0xf] %vm1392, %v1353
      %1395 = vst.msk [vmem:[%s219 + $0x8] sm:$0xf] %vm1392, %v1354
      %1396 = vst.msk [vmem:[%s219 + $0xc] sm:$0xf] %vm1392, %v1355
      %1397 = vst.msk [vmem:[%s219 + $0x10] sm:$0xf] %vm1392, %v1356
      %1398 = vst.msk [vmem:[%s219 + $0x14] sm:$0xf] %vm1392, %v1357
      %1399 = vst.msk [vmem:[%s219 + $0x18] sm:$0xf] %vm1392, %v1358
      %1400 = vst.msk [vmem:[%s219 + $0x1c] sm:$0xf] %vm1392, %v1359
      %1401 = vst.msk [vmem:[%s219 + $0x20] sm:$0xf] %vm1392, %v1360
      %1402 = vst.msk [vmem:[%s219 + $0x24] sm:$0xf] %vm1392, %v1361
      %1403 = vst.msk [vmem:[%s219 + $0x28] sm:$0xf] %vm1392, %v1362
      %1404 = vst.msk [vmem:[%s219 + $0x2c] sm:$0xf] %vm1392, %v1363
      %1405 = vst.msk [vmem:[%s219 + $0x30] sm:$0xf] %vm1392, %v1364
      %1406 = vst.msk [vmem:[%s219 + $0x34] sm:$0xf] %vm1392, %v1365
      %1407 = vst.msk [vmem:[%s219 + $0x38] sm:$0xf] %vm1392, %v1366
      %1408 = vst.msk [vmem:[%s219 + $0x3c] sm:$0xf] %vm1392, %v1367
      %1409 = vst.msk [vmem:[%s219 + $0x40] sm:$0xf] %vm1392, %v1368
      %1410 = vst.msk [vmem:[%s219 + $0x44] sm:$0xf] %vm1392, %v1369
      %1411 = vst.msk [vmem:[%s219 + $0x48] sm:$0xf] %vm1392, %v1370
      %1412 = vst.msk [vmem:[%s219 + $0x4c] sm:$0xf] %vm1392, %v1371
      %s1413 = smul.u32 20, %s20
      %p1414 = scmp.lt.s32.totalorder %s19, 1
      %s1415 = scalar_select %p1414, %s19, 1
      %p1416 = scmp.lt.s32.totalorder %s1413, 19
      %s1417 = scalar_select %p1416, %s1413, 19
      %s1418 = smul.addr %s1415, 20
      %s1419 = sadd.s32 %s1417, %s1418
      %s1420 = smul.addr %s1419, 4
      %s1421 = scalar_lea.vmem %s4, %s1420
      // Predicated region
      $region37: #{tpu_custom_call.1} parent=35 // pred_check
        %p1422 = pneg %p136
      $region38: #{tpu_custom_call.1} parent=35 // pred_check_branch
        %1424 = sbr.rel (%p1422) target = $region40
      $region39: #{tpu_custom_call.1} parent=35 // pred_region
        %s1425 = smul.u32 20, %s20
      $region40: #{tpu_custom_call.1} parent=35 // pred_fallthru
        _
    $region36: #{tpu_custom_call.1} parent=5 // pred_fallthru
      _
    %p1426 = scmp.le.s32.totalorder 2, %s10
    // Predicated region
    $region41: #{tpu_custom_call.1} parent=5 // pred_check
      %p1427 = pneg %p1426
    $region42: #{tpu_custom_call.1} parent=5 // pred_check_branch
      %1429 = sbr.rel (%p1427) target = $region44
    $region43: #{tpu_custom_call.1} parent=5 // pred_region
      %s1430 = ssub.s32 %s10, 2
      // Predicated region
      $region45: #{tpu_custom_call.1} parent=43 // pred_check
        %p1431 = pneg %p142
      $region46: #{tpu_custom_call.1} parent=43 // pred_check_branch
        %1433 = sbr.rel (%p1431) target = $region48
      $region47: #{tpu_custom_call.1} parent=43 // pred_region
        %s1434 = smul.u32 20, %s22
        %p1435 = scmp.lt.s32.totalorder %s21, 1
        %s1436 = scalar_select %p1435, %s21, 1
        %p1437 = scmp.lt.s32.totalorder %s1434, 19
        %s1438 = scalar_select %p1437, %s1434, 19
        %s1439 = smul.addr %s1436, 20
        %s1440 = sadd.s32 %s1438, %s1439
        %s1441 = smul.addr %s1440, 4
        %s1442 = scalar_lea.vmem %s4, %s1441
      $region48: #{tpu_custom_call.1} parent=43 // pred_fallthru
        _
    $region44: #{tpu_custom_call.1} parent=5 // pred_fallthru
      _
  $region6: #{tpu_custom_call.1} parent=0 // loop_footer
    %s14 = sadd.s32 1, %s10
  $region7: #{tpu_custom_call.1} parent=0 // loop_footer_branch
    %9 = sbr.rel target = $region3
  $region8: #{tpu_custom_call.1} parent=0 // loop_exit
    _

</llo_original>
